<compile_context>
chip_gen: v7x
topology: tpu7x:2x2x1
jax: 0.10.0
libtpu: 0.0.40
codegen_flags: <defaults>
</compile_context>

<pallas_src>
import jax
import jax.numpy as jnp
from jax import lax
from jax.experimental import pallas as pl
from jax.experimental.pallas import tpu as pltpu

LANES = 128  # fc2 output padded to one full vreg lane span


def lstm_model_kernel(x_ref, w_ih_ref, w_hh_ref, b_ref,
                      w1_ref, b1_ref, w2_ref, b2_ref, out_ref,
                      gates_x_ref):
    TB, I = x_ref.shape                 # x is pre-flattened to (T*B, I)
    H = w_hh_ref.shape[0]
    B = out_ref.shape[0]
    T = TB // B

    # --- Hoisted input projection (VPU, not MXU) -----------------------------
    # I is tiny, so an MXU matmul here would be 2/128-lane dense and serialize a
    # full fill/drain + pop sequence before the recurrence can start. Do it as I
    # broadcast-FMAs instead; result lives in a VMEM scratch the loop slices.
    x = x_ref[...]                                            # (T*B, I)
    gx = x[:, 0:1] * w_ih_ref[0:1, :]                         # (T*B, 4H)
    for i in range(1, I):                                     # I static & tiny
        gx = gx + x[:, i:i + 1] * w_ih_ref[i:i + 1, :]
    gates_x_ref[...] = gx + b_ref[...]                        # (T*B, 4H)

    # --- Recurrence -----------------------------------------------------------
    def step(t, carry):
        h, c = carry
        row = pl.multiple_of(t * B, B)                        # sublane-aligned
        g_x = gates_x_ref[pl.ds(row, B), :]                   # (B, 4H)
        # W_hh re-read from VMEM each step (cheap, dependence-free vld issued
        # early by the scheduler) rather than pinned in ~16 vregs across the
        # unrolled body.
        gates = g_x + jnp.dot(h, w_hh_ref[...],
                              preferred_element_type=jnp.float32)

        # One full-width sigmoid (covers i,f,o; g's columns are harmless filler)
        # and one half-width, 128-lane-aligned tanh over [2H:4H] (covers g; o's
        # columns are filler). Gate order matches PyTorch: i, f, g, o.
        sig = jax.nn.sigmoid(gates)
        th = jnp.tanh(gates[:, 2 * H:4 * H])
        i_g = sig[:, 0 * H:1 * H]
        f_g = sig[:, 1 * H:2 * H]
        g_g = th[:, 0:H]
        o_g = sig[:, 3 * H:4 * H]

        c_new = f_g * c + i_g * g_g
        h_new = o_g * jnp.tanh(c_new)
        return (h_new, c_new)

    h0 = jnp.zeros((B, H), jnp.float32)
    # Fully unroll the short fixed-trip-count recurrence for LLO/ILP visibility.
    h_last, _ = lax.fori_loop(0, T, step, (h0, h0), unroll=True)

    # --- fc1 -> relu -> fc2 (lane-dense epilogue) -----------------------------
    hid = jnp.dot(h_last, w1_ref[...],
                  preferred_element_type=jnp.float32) + b1_ref[...]
    hid = jnp.maximum(hid, 0.0)
    # w2/b2 arrive zero-padded to 128 output lanes, so this matmul is lane-dense
    # and the store is one unmasked (B, 128) vst; the wrapper slices the real
    # output column(s) back out.
    out_ref[...] = jnp.dot(hid, w2_ref[...],
                           preferred_element_type=jnp.float32) + b2_ref[...]


def lstm_model_forward(x, params):
    """x: (T, B, I) float32 -> (B, output_size) float32."""
    w_ih, w_hh, b_comb, w1, b1, w2, b2 = params
    T, B, I = x.shape
    H = w_hh.shape[0]
    out_size = w2.shape[1]

    x_flat = x.reshape(T * B, I)        # cheap wrapper-side reshape; kernel is reshape-free

    # Lane-dense fc2 tail: pad (64, out_size) -> (64, 128); slice outside the kernel.
    w2_p = jnp.zeros((w2.shape[0], LANES), jnp.float32).at[:, :out_size].set(w2)
    b2_p = jnp.zeros((1, LANES), jnp.float32).at[:, :out_size].set(b2)

    vmem_spec = pl.BlockSpec(memory_space=pltpu.MemorySpace.VMEM)
    # Whole footprint (~200 KiB) is VMEM-resident on every generation; no grid,
    # so no tiling / vmem_limit overrides are needed.
    out_padded = pl.pallas_call(
        lstm_model_kernel,
        out_shape=jax.ShapeDtypeStruct((B, LANES), jnp.float32),
        in_specs=[vmem_spec] * 8,
        out_specs=vmem_spec,
        scratch_shapes=[pltpu.VMEM((T * B, 4 * H), jnp.float32)],
    )(x_flat, w_ih, w_hh, b_comb, w1, b1, w2_p, b2_p)
    return out_padded[:, :out_size]


def init_params(key, input_size, hidden_size, output_size):
    """Deterministic synthetic init matching the PyTorch module's shapes."""
    ks = jax.random.split(key, 8)
    std = 1.0 / jnp.sqrt(hidden_size)
    u = lambda k, shape, s: jax.random.uniform(k, shape, jnp.float32, -s, s)

    w_ih = u(ks[0], (input_size, hidden_size * 4), std)
    w_hh = u(ks[1], (hidden_size, hidden_size * 4), std)
    b_ih = u(ks[2], (hidden_size * 4,), std)
    b_hh = u(ks[3], (hidden_size * 4,), std)
    b_comb = (b_ih + b_hh)[None, :]                       # (1, 4H)

    std1 = 1.0 / jnp.sqrt(hidden_size)
    w1 = u(ks[4], (hidden_size, 64), std1)                # fc1: Linear(H, 64), stored (in, out)
    b1 = u(ks[5], (1, 64), std1)
    std2 = 1.0 / jnp.sqrt(64.0)
    w2 = u(ks[6], (64, output_size), std2)                # fc2: Linear(64, output_size)
    b2 = u(ks[7], (1, output_size), std2)
    return (w_ih, w_hh, b_comb, w1, b1, w2, b2)


def reference_forward(x, params):
    """Pure-JAX reference mirroring the PyTorch forward, for validation."""
    w_ih, w_hh, b_comb, w1, b1, w2, b2 = params
    T, B, _ = x.shape
    H = w_hh.shape[0]
    h = jnp.zeros((B, H), jnp.float32)
    c = jnp.zeros((B, H), jnp.float32)
    for t in range(T):
        gates = x[t] @ w_ih + h @ w_hh + b_comb
        i_g = jax.nn.sigmoid(gates[:, 0 * H:1 * H])
        f_g = jax.nn.sigmoid(gates[:, 1 * H:2 * H])
        g_g = jnp.tanh(gates[:, 2 * H:3 * H])
        o_g = jax.nn.sigmoid(gates[:, 3 * H:4 * H])
        c = f_g * c + i_g * g_g
        h = o_g * jnp.tanh(c)
    hid = jnp.maximum(h @ w1 + b1, 0.0)
    return hid @ w2 + b2


if __name__ == "__main__":
    # Small shapes consistent with the module: x is (seq_len, batch, input_size),
    # hidden_size matches the module's hidden_size=64.
    seq_len, batch, input_size = 8, 8, 2
    hidden_size, output_size = 64, 1

    key = jax.random.PRNGKey(0)
    k_x, k_p = jax.random.split(key)
    x = jax.random.normal(k_x, (seq_len, batch, input_size), jnp.float32)
    params = init_params(k_p, input_size, hidden_size, output_size)

    out = lstm_model_forward(x, params)
    out = jax.block_until_ready(out)

    ref = reference_forward(x, params)
    assert out.shape == (batch, output_size), out.shape
    assert jnp.allclose(out, ref, atol=1e-5, rtol=1e-5), (out, ref)

    print("KERNEL_OK")
</pallas_src>

<mosaic_0001>
module attributes {stable_mosaic.version = 11 : i64} {
  func.func @lstm_model_kernel(%arg0: memref<64x2xf32, #tpu.memory_space<vmem>>, %arg1: memref<2x256xf32, #tpu.memory_space<vmem>>, %arg2: memref<64x256xf32, #tpu.memory_space<vmem>>, %arg3: memref<1x256xf32, #tpu.memory_space<vmem>>, %arg4: memref<64x64xf32, #tpu.memory_space<vmem>>, %arg5: memref<1x64xf32, #tpu.memory_space<vmem>>, %arg6: memref<64x128xf32, #tpu.memory_space<vmem>>, %arg7: memref<1x128xf32, #tpu.memory_space<vmem>>, %arg8: memref<8x128xf32, #tpu.memory_space<vmem>>, %arg9: memref<64x256xf32, #tpu.memory_space<vmem>>) attributes {dimension_semantics = [], scalar_prefetch = 0 : i64, scratch_operands = 1 : i64, tpu.core_type = #tpu.core_type<tc>} {
    %c0 = arith.constant 0 : index
    %c0_0 = arith.constant 0 : index
    %0 = vector.load %arg0[%c0, %c0_0] : memref<64x2xf32, #tpu.memory_space<vmem>>, vector<64x2xf32>
    %1 = vector.extract_strided_slice %0 {offsets = [0, 0], sizes = [64, 1], strides = [1, 1]} : vector<64x2xf32> to vector<64x1xf32>
    %c0_1 = arith.constant 0 : index
    %c0_2 = arith.constant 0 : index
    %2 = vector.load %arg1[%c0_1, %c0_2] : memref<2x256xf32, #tpu.memory_space<vmem>>, vector<1x256xf32>
    %3 = vector.broadcast %1 : vector<64x1xf32> to vector<64x256xf32>
    %4 = vector.broadcast %2 : vector<1x256xf32> to vector<64x256xf32>
    %5 = arith.mulf %3, %4 : vector<64x256xf32>
    %6 = vector.extract_strided_slice %0 {offsets = [0, 1], sizes = [64, 1], strides = [1, 1]} : vector<64x2xf32> to vector<64x1xf32>
    %c1 = arith.constant 1 : index
    %c0_3 = arith.constant 0 : index
    %7 = vector.load %arg1[%c1, %c0_3] : memref<2x256xf32, #tpu.memory_space<vmem>>, vector<1x256xf32>
    %8 = vector.broadcast %6 : vector<64x1xf32> to vector<64x256xf32>
    %9 = vector.broadcast %7 : vector<1x256xf32> to vector<64x256xf32>
    %10 = arith.mulf %8, %9 : vector<64x256xf32>
    %11 = arith.addf %5, %10 : vector<64x256xf32>
    %c0_4 = arith.constant 0 : index
    %c0_5 = arith.constant 0 : index
    %12 = vector.load %arg3[%c0_4, %c0_5] : memref<1x256xf32, #tpu.memory_space<vmem>>, vector<1x256xf32>
    %13 = vector.broadcast %12 : vector<1x256xf32> to vector<64x256xf32>
    %14 = arith.addf %11, %13 : vector<64x256xf32>
    %c0_6 = arith.constant 0 : index
    %c0_7 = arith.constant 0 : index
    %15 = vector.load %arg9[%c0_6, %c0_7] : memref<64x256xf32, #tpu.memory_space<vmem>>, vector<64x256xf32>
    tpu.vector_store %arg9[%c0_6, %c0_7], %14 {strides = array<i32>} : memref<64x256xf32, #tpu.memory_space<vmem>>, vector<64x256xf32>,
    %cst = arith.constant 0.000000e+00 : f32
    %16 = vector.broadcast %cst : f32 to vector<8x64xf32>
    %c0_i32 = arith.constant 0 : i32
    %c8_i32 = arith.constant 8 : i32
    %17 = arith.muli %c0_i32, %c8_i32 : i32
    %18 = tpu.assume_multiple %17, 8 : i32
    %19 = arith.index_cast %18 : i32 to index
    %c0_8 = arith.constant 0 : index
    %20 = vector.load %arg9[%19, %c0_8] : memref<64x256xf32, #tpu.memory_space<vmem>>, vector<8x256xf32>
    %c0_9 = arith.constant 0 : index
    %c0_10 = arith.constant 0 : index
    %21 = vector.load %arg2[%c0_9, %c0_10] : memref<64x256xf32, #tpu.memory_space<vmem>>, vector<64x256xf32>
    %cst_11 = arith.constant dense<0.000000e+00> : vector<8x256xf32>
    %22 = tpu.matmul %16, %21, %cst_11 {dimension_numbers = #tpu.dot_dimension_numbers<[1], [0], [0], [1], [0, 0, 1, 1], [], []>} : vector<8x64xf32>, vector<64x256xf32>, vector<8x256xf32> -> vector<8x256xf32>
    %23 = arith.addf %20, %22 : vector<8x256xf32>
    %24 = arith.negf %23 : vector<8x256xf32>
    %25 = math.exp %24 : vector<8x256xf32>
    %cst_12 = arith.constant 1.000000e+00 : f32
    %26 = vector.broadcast %cst_12 : f32 to vector<8x256xf32>
    %27 = arith.addf %26, %25 : vector<8x256xf32>
    %28 = arith.divf %26, %27 : vector<8x256xf32>
    %29 = vector.extract_strided_slice %23 {offsets = [0, 128], sizes = [8, 128], strides = [1, 1]} : vector<8x256xf32> to vector<8x128xf32>
    %30 = math.tanh %29 : vector<8x128xf32>
    %31 = vector.extract_strided_slice %28 {offsets = [0, 0], sizes = [8, 64], strides = [1, 1]} : vector<8x256xf32> to vector<8x64xf32>
    %32 = vector.extract_strided_slice %28 {offsets = [0, 64], sizes = [8, 64], strides = [1, 1]} : vector<8x256xf32> to vector<8x64xf32>
    %33 = vector.extract_strided_slice %30 {offsets = [0, 0], sizes = [8, 64], strides = [1, 1]} : vector<8x128xf32> to vector<8x64xf32>
    %34 = vector.extract_strided_slice %28 {offsets = [0, 192], sizes = [8, 64], strides = [1, 1]} : vector<8x256xf32> to vector<8x64xf32>
    %35 = arith.mulf %32, %16 : vector<8x64xf32>
    %36 = arith.mulf %31, %33 : vector<8x64xf32>
    %37 = arith.addf %35, %36 : vector<8x64xf32>
    %38 = math.tanh %37 : vector<8x64xf32>
    %39 = arith.mulf %34, %38 : vector<8x64xf32>
    %c1_i32 = arith.constant 1 : i32
    %c8_i32_13 = arith.constant 8 : i32
    %40 = arith.muli %c1_i32, %c8_i32_13 : i32
    %41 = tpu.assume_multiple %40, 8 : i32
    %42 = arith.index_cast %41 : i32 to index
    %c0_14 = arith.constant 0 : index
    %43 = vector.load %arg9[%42, %c0_14] : memref<64x256xf32, #tpu.memory_space<vmem>>, vector<8x256xf32>
    %c0_15 = arith.constant 0 : index
    %c0_16 = arith.constant 0 : index
    %44 = vector.load %arg2[%c0_15, %c0_16] : memref<64x256xf32, #tpu.memory_space<vmem>>, vector<64x256xf32>
    %cst_17 = arith.constant dense<0.000000e+00> : vector<8x256xf32>
    %45 = tpu.matmul %39, %44, %cst_17 {dimension_numbers = #tpu.dot_dimension_numbers<[1], [0], [0], [1], [0, 0, 1, 1], [], []>} : vector<8x64xf32>, vector<64x256xf32>, vector<8x256xf32> -> vector<8x256xf32>
    %46 = arith.addf %43, %45 : vector<8x256xf32>
    %47 = arith.negf %46 : vector<8x256xf32>
    %48 = math.exp %47 : vector<8x256xf32>
    %cst_18 = arith.constant 1.000000e+00 : f32
    %49 = vector.broadcast %cst_18 : f32 to vector<8x256xf32>
    %50 = arith.addf %49, %48 : vector<8x256xf32>
    %51 = arith.divf %49, %50 : vector<8x256xf32>
    %52 = vector.extract_strided_slice %46 {offsets = [0, 128], sizes = [8, 128], strides = [1, 1]} : vector<8x256xf32> to vector<8x128xf32>
    %53 = math.tanh %52 : vector<8x128xf32>
    %54 = vector.extract_strided_slice %51 {offsets = [0, 0], sizes = [8, 64], strides = [1, 1]} : vector<8x256xf32> to vector<8x64xf32>
    %55 = vector.extract_strided_slice %51 {offsets = [0, 64], sizes = [8, 64], strides = [1, 1]} : vector<8x256xf32> to vector<8x64xf32>
    %56 = vector.extract_strided_slice %53 {offsets = [0, 0], sizes = [8, 64], strides = [1, 1]} : vector<8x128xf32> to vector<8x64xf32>
    %57 = vector.extract_strided_slice %51 {offsets = [0, 192], sizes = [8, 64], strides = [1, 1]} : vector<8x256xf32> to vector<8x64xf32>
    %58 = arith.mulf %55, %37 : vector<8x64xf32>
    %59 = arith.mulf %54, %56 : vector<8x64xf32>
    %60 = arith.addf %58, %59 : vector<8x64xf32>
    %61 = math.tanh %60 : vector<8x64xf32>
    %62 = arith.mulf %57, %61 : vector<8x64xf32>
    %c2_i32 = arith.constant 2 : i32
    %c8_i32_19 = arith.constant 8 : i32
    %63 = arith.muli %c2_i32, %c8_i32_19 : i32
    %64 = tpu.assume_multiple %63, 8 : i32
    %65 = arith.index_cast %64 : i32 to index
    %c0_20 = arith.constant 0 : index
    %66 = vector.load %arg9[%65, %c0_20] : memref<64x256xf32, #tpu.memory_space<vmem>>, vector<8x256xf32>
    %c0_21 = arith.constant 0 : index
    %c0_22 = arith.constant 0 : index
    %67 = vector.load %arg2[%c0_21, %c0_22] : memref<64x256xf32, #tpu.memory_space<vmem>>, vector<64x256xf32>
    %cst_23 = arith.constant dense<0.000000e+00> : vector<8x256xf32>
    %68 = tpu.matmul %62, %67, %cst_23 {dimension_numbers = #tpu.dot_dimension_numbers<[1], [0], [0], [1], [0, 0, 1, 1], [], []>} : vector<8x64xf32>, vector<64x256xf32>, vector<8x256xf32> -> vector<8x256xf32>
    %69 = arith.addf %66, %68 : vector<8x256xf32>
    %70 = arith.negf %69 : vector<8x256xf32>
    %71 = math.exp %70 : vector<8x256xf32>
    %cst_24 = arith.constant 1.000000e+00 : f32
    %72 = vector.broadcast %cst_24 : f32 to vector<8x256xf32>
    %73 = arith.addf %72, %71 : vector<8x256xf32>
    %74 = arith.divf %72, %73 : vector<8x256xf32>
    %75 = vector.extract_strided_slice %69 {offsets = [0, 128], sizes = [8, 128], strides = [1, 1]} : vector<8x256xf32> to vector<8x128xf32>
    %76 = math.tanh %75 : vector<8x128xf32>
    %77 = vector.extract_strided_slice %74 {offsets = [0, 0], sizes = [8, 64], strides = [1, 1]} : vector<8x256xf32> to vector<8x64xf32>
    %78 = vector.extract_strided_slice %74 {offsets = [0, 64], sizes = [8, 64], strides = [1, 1]} : vector<8x256xf32> to vector<8x64xf32>
    %79 = vector.extract_strided_slice %76 {offsets = [0, 0], sizes = [8, 64], strides = [1, 1]} : vector<8x128xf32> to vector<8x64xf32>
    %80 = vector.extract_strided_slice %74 {offsets = [0, 192], sizes = [8, 64], strides = [1, 1]} : vector<8x256xf32> to vector<8x64xf32>
    %81 = arith.mulf %78, %60 : vector<8x64xf32>
    %82 = arith.mulf %77, %79 : vector<8x64xf32>
    %83 = arith.addf %81, %82 : vector<8x64xf32>
    %84 = math.tanh %83 : vector<8x64xf32>
    %85 = arith.mulf %80, %84 : vector<8x64xf32>
    %c3_i32 = arith.constant 3 : i32
    %c8_i32_25 = arith.constant 8 : i32
    %86 = arith.muli %c3_i32, %c8_i32_25 : i32
    %87 = tpu.assume_multiple %86, 8 : i32
    %88 = arith.index_cast %87 : i32 to index
    %c0_26 = arith.constant 0 : index
    %89 = vector.load %arg9[%88, %c0_26] : memref<64x256xf32, #tpu.memory_space<vmem>>, vector<8x256xf32>
    %c0_27 = arith.constant 0 : index
    %c0_28 = arith.constant 0 : index
    %90 = vector.load %arg2[%c0_27, %c0_28] : memref<64x256xf32, #tpu.memory_space<vmem>>, vector<64x256xf32>
    %cst_29 = arith.constant dense<0.000000e+00> : vector<8x256xf32>
    %91 = tpu.matmul %85, %90, %cst_29 {dimension_numbers = #tpu.dot_dimension_numbers<[1], [0], [0], [1], [0, 0, 1, 1], [], []>} : vector<8x64xf32>, vector<64x256xf32>, vector<8x256xf32> -> vector<8x256xf32>
    %92 = arith.addf %89, %91 : vector<8x256xf32>
    %93 = arith.negf %92 : vector<8x256xf32>
    %94 = math.exp %93 : vector<8x256xf32>
    %cst_30 = arith.constant 1.000000e+00 : f32
    %95 = vector.broadcast %cst_30 : f32 to vector<8x256xf32>
    %96 = arith.addf %95, %94 : vector<8x256xf32>
    %97 = arith.divf %95, %96 : vector<8x256xf32>
    %98 = vector.extract_strided_slice %92 {offsets = [0, 128], sizes = [8, 128], strides = [1, 1]} : vector<8x256xf32> to vector<8x128xf32>
    %99 = math.tanh %98 : vector<8x128xf32>
    %100 = vector.extract_strided_slice %97 {offsets = [0, 0], sizes = [8, 64], strides = [1, 1]} : vector<8x256xf32> to vector<8x64xf32>
    %101 = vector.extract_strided_slice %97 {offsets = [0, 64], sizes = [8, 64], strides = [1, 1]} : vector<8x256xf32> to vector<8x64xf32>
    %102 = vector.extract_strided_slice %99 {offsets = [0, 0], sizes = [8, 64], strides = [1, 1]} : vector<8x128xf32> to vector<8x64xf32>
    %103 = vector.extract_strided_slice %97 {offsets = [0, 192], sizes = [8, 64], strides = [1, 1]} : vector<8x256xf32> to vector<8x64xf32>
    %104 = arith.mulf %101, %83 : vector<8x64xf32>
    %105 = arith.mulf %100, %102 : vector<8x64xf32>
    %106 = arith.addf %104, %105 : vector<8x64xf32>
    %107 = math.tanh %106 : vector<8x64xf32>
    %108 = arith.mulf %103, %107 : vector<8x64xf32>
    %c4_i32 = arith.constant 4 : i32
    %c8_i32_31 = arith.constant 8 : i32
    %109 = arith.muli %c4_i32, %c8_i32_31 : i32
    %110 = tpu.assume_multiple %109, 8 : i32
    %111 = arith.index_cast %110 : i32 to index
    %c0_32 = arith.constant 0 : index
    %112 = vector.load %arg9[%111, %c0_32] : memref<64x256xf32, #tpu.memory_space<vmem>>, vector<8x256xf32>
    %c0_33 = arith.constant 0 : index
    %c0_34 = arith.constant 0 : index
    %113 = vector.load %arg2[%c0_33, %c0_34] : memref<64x256xf32, #tpu.memory_space<vmem>>, vector<64x256xf32>
    %cst_35 = arith.constant dense<0.000000e+00> : vector<8x256xf32>
    %114 = tpu.matmul %108, %113, %cst_35 {dimension_numbers = #tpu.dot_dimension_numbers<[1], [0], [0], [1], [0, 0, 1, 1], [], []>} : vector<8x64xf32>, vector<64x256xf32>, vector<8x256xf32> -> vector<8x256xf32>
    %115 = arith.addf %112, %114 : vector<8x256xf32>
    %116 = arith.negf %115 : vector<8x256xf32>
    %117 = math.exp %116 : vector<8x256xf32>
    %cst_36 = arith.constant 1.000000e+00 : f32
    %118 = vector.broadcast %cst_36 : f32 to vector<8x256xf32>
    %119 = arith.addf %118, %117 : vector<8x256xf32>
    %120 = arith.divf %118, %119 : vector<8x256xf32>
    %121 = vector.extract_strided_slice %115 {offsets = [0, 128], sizes = [8, 128], strides = [1, 1]} : vector<8x256xf32> to vector<8x128xf32>
    %122 = math.tanh %121 : vector<8x128xf32>
    %123 = vector.extract_strided_slice %120 {offsets = [0, 0], sizes = [8, 64], strides = [1, 1]} : vector<8x256xf32> to vector<8x64xf32>
    %124 = vector.extract_strided_slice %120 {offsets = [0, 64], sizes = [8, 64], strides = [1, 1]} : vector<8x256xf32> to vector<8x64xf32>
    %125 = vector.extract_strided_slice %122 {offsets = [0, 0], sizes = [8, 64], strides = [1, 1]} : vector<8x128xf32> to vector<8x64xf32>
    %126 = vector.extract_strided_slice %120 {offsets = [0, 192], sizes = [8, 64], strides = [1, 1]} : vector<8x256xf32> to vector<8x64xf32>
    %127 = arith.mulf %124, %106 : vector<8x64xf32>
    %128 = arith.mulf %123, %125 : vector<8x64xf32>
    %129 = arith.addf %127, %128 : vector<8x64xf32>
    %130 = math.tanh %129 : vector<8x64xf32>
    %131 = arith.mulf %126, %130 : vector<8x64xf32>
    %c5_i32 = arith.constant 5 : i32
    %c8_i32_37 = arith.constant 8 : i32
    %132 = arith.muli %c5_i32, %c8_i32_37 : i32
    %133 = tpu.assume_multiple %132, 8 : i32
    %134 = arith.index_cast %133 : i32 to index
    %c0_38 = arith.constant 0 : index
    %135 = vector.load %arg9[%134, %c0_38] : memref<64x256xf32, #tpu.memory_space<vmem>>, vector<8x256xf32>
    %c0_39 = arith.constant 0 : index
    %c0_40 = arith.constant 0 : index
    %136 = vector.load %arg2[%c0_39, %c0_40] : memref<64x256xf32, #tpu.memory_space<vmem>>, vector<64x256xf32>
    %cst_41 = arith.constant dense<0.000000e+00> : vector<8x256xf32>
    %137 = tpu.matmul %131, %136, %cst_41 {dimension_numbers = #tpu.dot_dimension_numbers<[1], [0], [0], [1], [0, 0, 1, 1], [], []>} : vector<8x64xf32>, vector<64x256xf32>, vector<8x256xf32> -> vector<8x256xf32>
    %138 = arith.addf %135, %137 : vector<8x256xf32>
    %139 = arith.negf %138 : vector<8x256xf32>
    %140 = math.exp %139 : vector<8x256xf32>
    %cst_42 = arith.constant 1.000000e+00 : f32
    %141 = vector.broadcast %cst_42 : f32 to vector<8x256xf32>
    %142 = arith.addf %141, %140 : vector<8x256xf32>
    %143 = arith.divf %141, %142 : vector<8x256xf32>
    %144 = vector.extract_strided_slice %138 {offsets = [0, 128], sizes = [8, 128], strides = [1, 1]} : vector<8x256xf32> to vector<8x128xf32>
    %145 = math.tanh %144 : vector<8x128xf32>
    %146 = vector.extract_strided_slice %143 {offsets = [0, 0], sizes = [8, 64], strides = [1, 1]} : vector<8x256xf32> to vector<8x64xf32>
    %147 = vector.extract_strided_slice %143 {offsets = [0, 64], sizes = [8, 64], strides = [1, 1]} : vector<8x256xf32> to vector<8x64xf32>
    %148 = vector.extract_strided_slice %145 {offsets = [0, 0], sizes = [8, 64], strides = [1, 1]} : vector<8x128xf32> to vector<8x64xf32>
    %149 = vector.extract_strided_slice %143 {offsets = [0, 192], sizes = [8, 64], strides = [1, 1]} : vector<8x256xf32> to vector<8x64xf32>
    %150 = arith.mulf %147, %129 : vector<8x64xf32>
    %151 = arith.mulf %146, %148 : vector<8x64xf32>
    %152 = arith.addf %150, %151 : vector<8x64xf32>
    %153 = math.tanh %152 : vector<8x64xf32>
    %154 = arith.mulf %149, %153 : vector<8x64xf32>
    %c6_i32 = arith.constant 6 : i32
    %c8_i32_43 = arith.constant 8 : i32
    %155 = arith.muli %c6_i32, %c8_i32_43 : i32
    %156 = tpu.assume_multiple %155, 8 : i32
    %157 = arith.index_cast %156 : i32 to index
    %c0_44 = arith.constant 0 : index
    %158 = vector.load %arg9[%157, %c0_44] : memref<64x256xf32, #tpu.memory_space<vmem>>, vector<8x256xf32>
    %c0_45 = arith.constant 0 : index
    %c0_46 = arith.constant 0 : index
    %159 = vector.load %arg2[%c0_45, %c0_46] : memref<64x256xf32, #tpu.memory_space<vmem>>, vector<64x256xf32>
    %cst_47 = arith.constant dense<0.000000e+00> : vector<8x256xf32>
    %160 = tpu.matmul %154, %159, %cst_47 {dimension_numbers = #tpu.dot_dimension_numbers<[1], [0], [0], [1], [0, 0, 1, 1], [], []>} : vector<8x64xf32>, vector<64x256xf32>, vector<8x256xf32> -> vector<8x256xf32>
    %161 = arith.addf %158, %160 : vector<8x256xf32>
    %162 = arith.negf %161 : vector<8x256xf32>
    %163 = math.exp %162 : vector<8x256xf32>
    %cst_48 = arith.constant 1.000000e+00 : f32
    %164 = vector.broadcast %cst_48 : f32 to vector<8x256xf32>
    %165 = arith.addf %164, %163 : vector<8x256xf32>
    %166 = arith.divf %164, %165 : vector<8x256xf32>
    %167 = vector.extract_strided_slice %161 {offsets = [0, 128], sizes = [8, 128], strides = [1, 1]} : vector<8x256xf32> to vector<8x128xf32>
    %168 = math.tanh %167 : vector<8x128xf32>
    %169 = vector.extract_strided_slice %166 {offsets = [0, 0], sizes = [8, 64], strides = [1, 1]} : vector<8x256xf32> to vector<8x64xf32>
    %170 = vector.extract_strided_slice %166 {offsets = [0, 64], sizes = [8, 64], strides = [1, 1]} : vector<8x256xf32> to vector<8x64xf32>
    %171 = vector.extract_strided_slice %168 {offsets = [0, 0], sizes = [8, 64], strides = [1, 1]} : vector<8x128xf32> to vector<8x64xf32>
    %172 = vector.extract_strided_slice %166 {offsets = [0, 192], sizes = [8, 64], strides = [1, 1]} : vector<8x256xf32> to vector<8x64xf32>
    %173 = arith.mulf %170, %152 : vector<8x64xf32>
    %174 = arith.mulf %169, %171 : vector<8x64xf32>
    %175 = arith.addf %173, %174 : vector<8x64xf32>
    %176 = math.tanh %175 : vector<8x64xf32>
    %177 = arith.mulf %172, %176 : vector<8x64xf32>
    %c7_i32 = arith.constant 7 : i32
    %c8_i32_49 = arith.constant 8 : i32
    %178 = arith.muli %c7_i32, %c8_i32_49 : i32
    %179 = tpu.assume_multiple %178, 8 : i32
    %180 = arith.index_cast %179 : i32 to index
    %c0_50 = arith.constant 0 : index
    %181 = vector.load %arg9[%180, %c0_50] : memref<64x256xf32, #tpu.memory_space<vmem>>, vector<8x256xf32>
    %c0_51 = arith.constant 0 : index
    %c0_52 = arith.constant 0 : index
    %182 = vector.load %arg2[%c0_51, %c0_52] : memref<64x256xf32, #tpu.memory_space<vmem>>, vector<64x256xf32>
    %cst_53 = arith.constant dense<0.000000e+00> : vector<8x256xf32>
    %183 = tpu.matmul %177, %182, %cst_53 {dimension_numbers = #tpu.dot_dimension_numbers<[1], [0], [0], [1], [0, 0, 1, 1], [], []>} : vector<8x64xf32>, vector<64x256xf32>, vector<8x256xf32> -> vector<8x256xf32>
    %184 = arith.addf %181, %183 : vector<8x256xf32>
    %185 = arith.negf %184 : vector<8x256xf32>
    %186 = math.exp %185 : vector<8x256xf32>
    %cst_54 = arith.constant 1.000000e+00 : f32
    %187 = vector.broadcast %cst_54 : f32 to vector<8x256xf32>
    %188 = arith.addf %187, %186 : vector<8x256xf32>
    %189 = arith.divf %187, %188 : vector<8x256xf32>
    %190 = vector.extract_strided_slice %184 {offsets = [0, 128], sizes = [8, 128], strides = [1, 1]} : vector<8x256xf32> to vector<8x128xf32>
    %191 = math.tanh %190 : vector<8x128xf32>
    %192 = vector.extract_strided_slice %189 {offsets = [0, 0], sizes = [8, 64], strides = [1, 1]} : vector<8x256xf32> to vector<8x64xf32>
    %193 = vector.extract_strided_slice %189 {offsets = [0, 64], sizes = [8, 64], strides = [1, 1]} : vector<8x256xf32> to vector<8x64xf32>
    %194 = vector.extract_strided_slice %191 {offsets = [0, 0], sizes = [8, 64], strides = [1, 1]} : vector<8x128xf32> to vector<8x64xf32>
    %195 = vector.extract_strided_slice %189 {offsets = [0, 192], sizes = [8, 64], strides = [1, 1]} : vector<8x256xf32> to vector<8x64xf32>
    %196 = arith.mulf %193, %175 : vector<8x64xf32>
    %197 = arith.mulf %192, %194 : vector<8x64xf32>
    %198 = arith.addf %196, %197 : vector<8x64xf32>
    %199 = math.tanh %198 : vector<8x64xf32>
    %200 = arith.mulf %195, %199 : vector<8x64xf32>
    %c8_i32_55 = arith.constant 8 : i32
    %c0_56 = arith.constant 0 : index
    %c0_57 = arith.constant 0 : index
    %201 = vector.load %arg4[%c0_56, %c0_57] : memref<64x64xf32, #tpu.memory_space<vmem>>, vector<64x64xf32>
    %cst_58 = arith.constant dense<0.000000e+00> : vector<8x64xf32>
    %202 = tpu.matmul %200, %201, %cst_58 {dimension_numbers = #tpu.dot_dimension_numbers<[1], [0], [0], [1], [0, 0, 1, 1], [], []>} : vector<8x64xf32>, vector<64x64xf32>, vector<8x64xf32> -> vector<8x64xf32>
    %c0_59 = arith.constant 0 : index
    %c0_60 = arith.constant 0 : index
    %203 = vector.load %arg5[%c0_59, %c0_60] : memref<1x64xf32, #tpu.memory_space<vmem>>, vector<1x64xf32>
    %204 = vector.broadcast %203 : vector<1x64xf32> to vector<8x64xf32>
    %205 = arith.addf %202, %204 : vector<8x64xf32>
    %cst_61 = arith.constant 0.000000e+00 : f32
    %206 = vector.broadcast %cst_61 : f32 to vector<8x64xf32>
    %207 = arith.maximumf %205, %206 : vector<8x64xf32>
    %c0_62 = arith.constant 0 : index
    %c0_63 = arith.constant 0 : index
    %208 = vector.load %arg6[%c0_62, %c0_63] : memref<64x128xf32, #tpu.memory_space<vmem>>, vector<64x128xf32>
    %cst_64 = arith.constant dense<0.000000e+00> : vector<8x128xf32>
    %209 = tpu.matmul %207, %208, %cst_64 {dimension_numbers = #tpu.dot_dimension_numbers<[1], [0], [0], [1], [0, 0, 1, 1], [], []>} : vector<8x64xf32>, vector<64x128xf32>, vector<8x128xf32> -> vector<8x128xf32>
    %c0_65 = arith.constant 0 : index
    %c0_66 = arith.constant 0 : index
    %210 = vector.load %arg7[%c0_65, %c0_66] : memref<1x128xf32, #tpu.memory_space<vmem>>, vector<1x128xf32>
    %211 = vector.broadcast %210 : vector<1x128xf32> to vector<8x128xf32>
    %212 = arith.addf %209, %211 : vector<8x128xf32>
    %c0_67 = arith.constant 0 : index
    %c0_68 = arith.constant 0 : index
    %213 = vector.load %arg8[%c0_67, %c0_68] : memref<8x128xf32, #tpu.memory_space<vmem>>, vector<8x128xf32>
    tpu.vector_store %arg8[%c0_67, %c0_68], %212 {strides = array<i32>} : memref<8x128xf32, #tpu.memory_space<vmem>>, vector<8x128xf32>,
    return
  }
}

</mosaic_0001>

<llo_original>
// kernel: tpu_custom_call.1
$region0: #{tpu_custom_call.1}
  #allocation0 [shape = 'u32[]', space=smem, size = 0x4, offset = 0x4, fixed_abs, tag = 'smem constant byte address 0x4 - core index']
  #allocation1 [shape = 'u32[144,128]{1,0:T(1,128)}', space=vmem, size = 0x12000, scoped, tag = 'internal scratch']
  #allocation2 [shape = 'f32[64,256]{1,0:T(8,128)}', space=vmem, size = 0x10000, scoped, tag = 'scratch operand']
  %s0 = inlined_call_operand.vmem [shape: f32[64,2], index: 0, kind: input, shape index: {}]
  %s1 = inlined_call_operand.vmem [shape: f32[2,256], index: 1, kind: input, shape index: {}]
  %s2 = inlined_call_operand.hbm [shape: f32[64,256], index: 2, kind: input, shape index: {}]
  %s3 = inlined_call_operand.vmem [shape: f32[1,256], index: 3, kind: input, shape index: {}]
  %s4 = inlined_call_operand.vmem [shape: f32[64,64], index: 4, kind: input, shape index: {}]
  %s5 = inlined_call_operand.vmem [shape: f32[1,64], index: 5, kind: input, shape index: {}]
  %s6 = inlined_call_operand.hbm [shape: f32[64,128], index: 6, kind: input, shape index: {}]
  %s7 = inlined_call_operand.vmem [shape: f32[1,128], index: 7, kind: input, shape index: {}]
  %s8 = inlined_call_operand.hbm [shape: f32[8,128], index: 8, kind: output, shape index: {}]
  %s9 = sld [smem:[#allocation0]]
  $region50: #{tpu_custom_call.1} parent=0
    _
  %s11 = ssub.s32 1, %s9
  %s12 = scalar_select 0, %s11, %s9
  $region1: #{tpu_custom_call.1} parent=0
    #allocation3 [shape = 'u8[65536]{0}', space=vmem, size = 0x10000, scoped, tag = 'input window, operand 2, single buffered']
    #allocation4 [shape = 's32[1]{0}', space=sflag, size = 0x4, scoped, tag = 'scoped memory for tpu_custom_call.1']
    #allocation5 [shape = 's32[1]{0}', space=sflag, size = 0x4, scoped, tag = 'scoped memory for tpu_custom_call.1']
    #allocation6 [shape = 'u8[32768]{0}', space=vmem, size = 0x8000, scoped, tag = 'input window, operand 6, single buffered']
    #allocation7 [shape = 's32[1]{0}', space=sflag, size = 0x4, scoped, tag = 'scoped memory for tpu_custom_call.1']
    #allocation8 [shape = 'u8[4096]{0}', space=vmem, size = 0x1000, scoped, tag = 'output window, operand 0, single buffered']
    %13 = vsyncpa [#allocation4], 0
    %14 = vsyncpa [#allocation7], 0
    %15 = vsyncpa [#allocation5], 0
    // Predicated region
    $region2: #{tpu_custom_call.1} parent=1 // pred_check
      _
    $region3: #{tpu_custom_call.1} parent=1 // pred_check_branch
      %17 = sbr.rel (0) target = $region5
    $region4: #{tpu_custom_call.1} parent=1 // pred_region
      _
    $region5: #{tpu_custom_call.1} parent=1 // pred_fallthru
      _
    // Predicated region
    $region6: #{tpu_custom_call.1} parent=1 // pred_check
      _
    $region7: #{tpu_custom_call.1} parent=1 // pred_check_branch
      %19 = sbr.rel (0) target = $region9
    $region8: #{tpu_custom_call.1} parent=1 // pred_region
      _
    $region9: #{tpu_custom_call.1} parent=1 // pred_fallthru
      _
    // Predicated region
    $region10: #{tpu_custom_call.1} parent=1 // pred_check
      _
    $region11: #{tpu_custom_call.1} parent=1 // pred_check_branch
      %21 = sbr.rel (0) target = $region13
    $region12: #{tpu_custom_call.1} parent=1 // pred_region
      %s23 = ssub.s32 2048, 2048
      %24 = vsyncadd [#allocation4], %s23
      %s25 = sshll.u32 [#allocation3], 4
      %s26 = int_to_ptr.vmem [resolvable:$true] %s25
      %31 = dma.hbm_to_vmem [thread:$0]  %s2, 2048, %s26, [#allocation4], 256, 256, 16
    $region13: #{tpu_custom_call.1} parent=1 // pred_fallthru
      _
    // Predicated region
    $region14: #{tpu_custom_call.1} parent=1 // pred_check
      _
    $region15: #{tpu_custom_call.1} parent=1 // pred_check_branch
      %33 = sbr.rel (0) target = $region17
    $region16: #{tpu_custom_call.1} parent=1 // pred_region
      _
    $region17: #{tpu_custom_call.1} parent=1 // pred_fallthru
      _
    // Predicated region
    $region18: #{tpu_custom_call.1} parent=1 // pred_check
      _
    $region19: #{tpu_custom_call.1} parent=1 // pred_check_branch
      %35 = sbr.rel (0) target = $region21
    $region20: #{tpu_custom_call.1} parent=1 // pred_region
      _
    $region21: #{tpu_custom_call.1} parent=1 // pred_fallthru
      _
    // Predicated region
    $region22: #{tpu_custom_call.1} parent=1 // pred_check
      _
    $region23: #{tpu_custom_call.1} parent=1 // pred_check_branch
      %37 = sbr.rel (0) target = $region25
    $region24: #{tpu_custom_call.1} parent=1 // pred_region
      _
    $region25: #{tpu_custom_call.1} parent=1 // pred_fallthru
      _
    // Predicated region
    $region26: #{tpu_custom_call.1} parent=1 // pred_check
      _
    $region27: #{tpu_custom_call.1} parent=1 // pred_check_branch
      %39 = sbr.rel (0) target = $region29
    $region28: #{tpu_custom_call.1} parent=1 // pred_region
      %s41 = ssub.s32 1024, 1024
      %42 = vsyncadd [#allocation7], %s41
      %s43 = sshll.u32 [#allocation6], 4
      %s44 = int_to_ptr.vmem [resolvable:$true] %s43
      %49 = dma.hbm_to_vmem [thread:$0]  %s6, 1024, %s44, [#allocation7], 128, 128, 8
    $region29: #{tpu_custom_call.1} parent=1 // pred_fallthru
      _
    // Predicated region
    $region30: #{tpu_custom_call.1} parent=1 // pred_check
      _
    $region31: #{tpu_custom_call.1} parent=1 // pred_check_branch
      %51 = sbr.rel (0) target = $region33
    $region32: #{tpu_custom_call.1} parent=1 // pred_region
      _
    $region33: #{tpu_custom_call.1} parent=1 // pred_fallthru
      _
    // Predicated region
    $region34: #{tpu_custom_call.1} parent=1 // pred_check
      _
    $region35: #{tpu_custom_call.1} parent=1 // pred_check_branch
      %53 = sbr.rel (0) target = $region37
    $region36: #{tpu_custom_call.1} parent=1 // pred_region
      %54 = dma.done [#allocation4], 2048
    $region37: #{tpu_custom_call.1} parent=1 // pred_fallthru
      _
    // Predicated region
    $region38: #{tpu_custom_call.1} parent=1 // pred_check
      _
    $region39: #{tpu_custom_call.1} parent=1 // pred_check_branch
      %56 = sbr.rel (0) target = $region41
    $region40: #{tpu_custom_call.1} parent=1 // pred_region
      %57 = dma.done [#allocation7], 1024
    $region41: #{tpu_custom_call.1} parent=1 // pred_fallthru
      _
    %v58 = vld [vmem:[%s0] sm:$0xff]
    %v59 = vld [vmem:[%s0 + $0x8] sm:$0xff]
    %v60 = vld [vmem:[%s0 + $0x10] sm:$0xff]
    %v61 = vld [vmem:[%s0 + $0x18] sm:$0xff]
    %v62 = vld [vmem:[%s0 + $0x20] sm:$0xff]
    %v63 = vld [vmem:[%s0 + $0x28] sm:$0xff]
    %v64 = vld [vmem:[%s0 + $0x30] sm:$0xff]
    %v65 = vld [vmem:[%s0 + $0x38] sm:$0xff]
    %v66 = vld [vmem:[%s1] ss:$2 sm:$0x3]
    %68 = vset.pattern.permute.xlu0 0
    %69 = vperm.xlu0 %68, %v58
    %v70 = vpop.permute.xlu0 %69
    %73 = vset.pattern.permute.xlu0 0
    %74 = vperm.xlu0 %73, %v59
    %v75 = vpop.permute.xlu0 %74
    %78 = vset.pattern.permute.xlu0 0
    %79 = vperm.xlu0 %78, %v60
    %v80 = vpop.permute.xlu0 %79
    %83 = vset.pattern.permute.xlu0 0
    %84 = vperm.xlu0 %83, %v61
    %v85 = vpop.permute.xlu0 %84
    %88 = vset.pattern.permute.xlu0 0
    %89 = vperm.xlu0 %88, %v62
    %v90 = vpop.permute.xlu0 %89
    %93 = vset.pattern.permute.xlu0 0
    %94 = vperm.xlu0 %93, %v63
    %v95 = vpop.permute.xlu0 %94
    %98 = vset.pattern.permute.xlu0 0
    %99 = vperm.xlu0 %98, %v64
    %v100 = vpop.permute.xlu0 %99
    %103 = vset.pattern.permute.xlu0 0
    %104 = vperm.xlu0 %103, %v65
    %v105 = vpop.permute.xlu0 %104
    %v108 = vlaneseq
    %v109 = vshrl.u32 %v108, 7
    %v110 = vsub.s32 0, %v109
    %v111 = vrot.slane %v66, %v110
    %v112 = vlaneseq
    %v113 = vshrl.u32 %v112, 7
    %v114 = vsub.s32 1, %v113
    %v115 = vrot.slane %v66, %v114
    %v118 = vmul.f32 %v70, %v111
    %v119 = vmul.f32 %v70, %v115
    %v120 = vmul.f32 %v75, %v111
    %v121 = vmul.f32 %v75, %v115
    %v122 = vmul.f32 %v80, %v111
    %v123 = vmul.f32 %v80, %v115
    %v124 = vmul.f32 %v85, %v111
    %v125 = vmul.f32 %v85, %v115
    %v126 = vmul.f32 %v90, %v111
    %v127 = vmul.f32 %v90, %v115
    %v128 = vmul.f32 %v95, %v111
    %v129 = vmul.f32 %v95, %v115
    %v130 = vmul.f32 %v100, %v111
    %v131 = vmul.f32 %v100, %v115
    %v132 = vmul.f32 %v105, %v111
    %v133 = vmul.f32 %v105, %v115
    %s134 = scalar_lea.vmem %s1, 1
    %v135 = vld [vmem:[%s134] ss:$2 sm:$0x3]
    %136 = vset.pattern.permute.xlu0 1
    %137 = vperm.xlu0 %136, %v58
    %v138 = vpop.permute.xlu0 %137
    %140 = vset.pattern.permute.xlu0 1
    %141 = vperm.xlu0 %140, %v59
    %v142 = vpop.permute.xlu0 %141
    %144 = vset.pattern.permute.xlu0 1
    %145 = vperm.xlu0 %144, %v60
    %v146 = vpop.permute.xlu0 %145
    %148 = vset.pattern.permute.xlu0 1
    %149 = vperm.xlu0 %148, %v61
    %v150 = vpop.permute.xlu0 %149
    %152 = vset.pattern.permute.xlu0 1
    %153 = vperm.xlu0 %152, %v62
    %v154 = vpop.permute.xlu0 %153
    %156 = vset.pattern.permute.xlu0 1
    %157 = vperm.xlu0 %156, %v63
    %v158 = vpop.permute.xlu0 %157
    %160 = vset.pattern.permute.xlu0 1
    %161 = vperm.xlu0 %160, %v64
    %v162 = vpop.permute.xlu0 %161
    %164 = vset.pattern.permute.xlu0 1
    %165 = vperm.xlu0 %164, %v65
    %v166 = vpop.permute.xlu0 %165
    %v169 = vlaneseq
    %v170 = vshrl.u32 %v169, 7
    %v171 = vsub.s32 0, %v170
    %v172 = vrot.slane %v135, %v171
    %v173 = vlaneseq
    %v174 = vshrl.u32 %v173, 7
    %v175 = vsub.s32 1, %v174
    %v176 = vrot.slane %v135, %v175
    %v179 = vmul.f32 %v138, %v172
    %v180 = vmul.f32 %v138, %v176
    %v181 = vmul.f32 %v142, %v172
    %v182 = vmul.f32 %v142, %v176
    %v183 = vmul.f32 %v146, %v172
    %v184 = vmul.f32 %v146, %v176
    %v185 = vmul.f32 %v150, %v172
    %v186 = vmul.f32 %v150, %v176
    %v187 = vmul.f32 %v154, %v172
    %v188 = vmul.f32 %v154, %v176
    %v189 = vmul.f32 %v158, %v172
    %v190 = vmul.f32 %v158, %v176
    %v191 = vmul.f32 %v162, %v172
    %v192 = vmul.f32 %v162, %v176
    %v193 = vmul.f32 %v166, %v172
    %v194 = vmul.f32 %v166, %v176
    %v195 = vadd.f32 %v118, %v179
    %v196 = vadd.f32 %v119, %v180
    %v197 = vadd.f32 %v120, %v181
    %v198 = vadd.f32 %v121, %v182
    %v199 = vadd.f32 %v122, %v183
    %v200 = vadd.f32 %v123, %v184
    %v201 = vadd.f32 %v124, %v185
    %v202 = vadd.f32 %v125, %v186
    %v203 = vadd.f32 %v126, %v187
    %v204 = vadd.f32 %v127, %v188
    %v205 = vadd.f32 %v128, %v189
    %v206 = vadd.f32 %v129, %v190
    %v207 = vadd.f32 %v130, %v191
    %v208 = vadd.f32 %v131, %v192
    %v209 = vadd.f32 %v132, %v193
    %v210 = vadd.f32 %v133, %v194
    %v211 = vld [vmem:[%s3] sm:$0x3]
    %v213 = vlaneseq
    %v214 = vshrl.u32 %v213, 7
    %v215 = vsub.s32 0, %v214
    %v216 = vrot.slane %v211, %v215
    %v217 = vlaneseq
    %v218 = vshrl.u32 %v217, 7
    %v219 = vsub.s32 1, %v218
    %v220 = vrot.slane %v211, %v219
    %v223 = vadd.f32 %v195, %v216
    %v224 = vadd.f32 %v196, %v220
    %v225 = vadd.f32 %v197, %v216
    %v226 = vadd.f32 %v198, %v220
    %v227 = vadd.f32 %v199, %v216
    %v228 = vadd.f32 %v200, %v220
    %v229 = vadd.f32 %v201, %v216
    %v230 = vadd.f32 %v202, %v220
    %v231 = vadd.f32 %v203, %v216
    %v232 = vadd.f32 %v204, %v220
    %v233 = vadd.f32 %v205, %v216
    %v234 = vadd.f32 %v206, %v220
    %v235 = vadd.f32 %v207, %v216
    %v236 = vadd.f32 %v208, %v220
    %v237 = vadd.f32 %v209, %v216
    %v238 = vadd.f32 %v210, %v220
    %239 = vst [vmem:[#allocation2] sm:$0xff] %v223
    %240 = vst [vmem:[#allocation2 + $0x8] sm:$0xff] %v224
    %241 = vst [vmem:[#allocation2 + $0x10] sm:$0xff] %v225
    %242 = vst [vmem:[#allocation2 + $0x18] sm:$0xff] %v226
    %243 = vst [vmem:[#allocation2 + $0x20] sm:$0xff] %v227
    %244 = vst [vmem:[#allocation2 + $0x28] sm:$0xff] %v228
    %245 = vst [vmem:[#allocation2 + $0x30] sm:$0xff] %v229
    %246 = vst [vmem:[#allocation2 + $0x38] sm:$0xff] %v230
    %247 = vst [vmem:[#allocation2 + $0x40] sm:$0xff] %v231
    %248 = vst [vmem:[#allocation2 + $0x48] sm:$0xff] %v232
    %249 = vst [vmem:[#allocation2 + $0x50] sm:$0xff] %v233
    %250 = vst [vmem:[#allocation2 + $0x58] sm:$0xff] %v234
    %251 = vst [vmem:[#allocation2 + $0x60] sm:$0xff] %v235
    %252 = vst [vmem:[#allocation2 + $0x68] sm:$0xff] %v236
    %253 = vst [vmem:[#allocation2 + $0x70] sm:$0xff] %v237
    %254 = vst [vmem:[#allocation2 + $0x78] sm:$0xff] %v238
    %s255 = smul.u32 0, 2
    %s256 = smul.addr %s255, 8
    %s257 = scalar_lea.vmem [#allocation2], %s256
    %v258 = vld [vmem:[%s257] sm:$0xff]
    %v259 = vld [vmem:[%s257 + $0x8] sm:$0xff]
    %v260 = vld [vmem:[#allocation3] sm:$0xff]
    %v261 = vld [vmem:[#allocation3 + $0x8] sm:$0xff]
    %v262 = vld [vmem:[#allocation3 + $0x10] sm:$0xff]
    %v263 = vld [vmem:[#allocation3 + $0x18] sm:$0xff]
    %v264 = vld [vmem:[#allocation3 + $0x20] sm:$0xff]
    %v265 = vld [vmem:[#allocation3 + $0x28] sm:$0xff]
    %v266 = vld [vmem:[#allocation3 + $0x30] sm:$0xff]
    %v267 = vld [vmem:[#allocation3 + $0x38] sm:$0xff]
    %v268 = vld [vmem:[#allocation3 + $0x40] sm:$0xff]
    %v269 = vld [vmem:[#allocation3 + $0x48] sm:$0xff]
    %v270 = vld [vmem:[#allocation3 + $0x50] sm:$0xff]
    %v271 = vld [vmem:[#allocation3 + $0x58] sm:$0xff]
    %v272 = vld [vmem:[#allocation3 + $0x60] sm:$0xff]
    %v273 = vld [vmem:[#allocation3 + $0x68] sm:$0xff]
    %v274 = vld [vmem:[#allocation3 + $0x70] sm:$0xff]
    %v275 = vld [vmem:[#allocation3 + $0x78] sm:$0xff]
    %vm276 = vcmask 523264
    %v278 = vsel %vm276, 0.0, 0
    %280 = vmatprep.subr.mxu0 %v261
    %281 = vmatpush1.msra.mxu0 %v260
    %282 = vmatprep.subr.mxu0 %v263
    %283 = vmatpush1.msra.mxu0 %v262
    %284 = vmatprep.subr.mxu0 %v265
    %285 = vmatpush1.msra.mxu0 %v264
    %286 = vmatprep.subr.mxu0 %v267
    %287 = vmatpush1.msra.mxu0 %v266
    %288 = vmatprep.subr.mxu0 %v269
    %289 = vmatpush1.msra.mxu0 %v268
    %290 = vmatprep.subr.mxu0 %v271
    %291 = vmatpush1.msra.mxu0 %v270
    %292 = vmatprep.subr.mxu0 %v273
    %293 = vmatpush1.msra.mxu0 %v272
    %294 = vmatprep.subr.mxu0 %v275
    %295 = vmatpush1.msra.mxu0 %v274
    %296 = vmatprep.subr.mxu0 0.0
    %297 = vmatpush1.msra.mxu0 0.0
    %298 = vmatprep.subr.mxu0 0.0
    %299 = vmatpush1.msra.mxu0 0.0
    %300 = vmatprep.subr.mxu0 0.0
    %301 = vmatpush1.msra.mxu0 0.0
    %302 = vmatprep.subr.mxu0 0.0
    %303 = vmatpush1.msra.mxu0 0.0
    %304 = vmatprep.subr.mxu0 0.0
    %305 = vmatpush1.msra.mxu0 0.0
    %306 = vmatprep.subr.mxu0 0.0
    %307 = vmatpush1.msra.mxu0 0.0
    %308 = vmatprep.subr.mxu0 0.0
    %309 = vmatpush1.msra.mxu0 0.0
    %310 = vmatprep.subr.mxu0 0.0
    %311 = vmatpush1.msra.mxu0 0.0
    %312 = vmatprep.subr.mxu0 0.0
    %313 = vmatpush1.msra.mxu0 0.0
    %314 = vmatprep.subr.mxu0 0.0
    %315 = vmatpush1.msra.mxu0 0.0
    %316 = vmatprep.subr.mxu0 0.0
    %317 = vmatpush1.msra.mxu0 0.0
    %318 = vmatprep.subr.mxu0 0.0
    %319 = vmatpush1.msra.mxu0 0.0
    %320 = vmatprep.subr.mxu0 0.0
    %321 = vmatpush1.msra.mxu0 0.0
    %322 = vmatprep.subr.mxu0 0.0
    %323 = vmatpush1.msra.mxu0 0.0
    %324 = vmatprep.subr.mxu0 0.0
    %325 = vmatpush1.msra.mxu0 0.0
    %326 = vmatprep.subr.mxu0 0.0
    %327 = vmatpush1.msra.mxu0 0.0
    %328 = vmatprep.subr.mxu0 0.0
    %329 = vmatpush1.msra.mxu0 0.0
    %330 = vmatprep.subr.mxu0 0.0
    %331 = vmatpush1.msra.mxu0 0.0
    %332 = vmatprep.subr.mxu0 0.0
    %333 = vmatpush1.msra.mxu0 0.0
    %334 = vmatprep.subr.mxu0 0.0
    %335 = vmatpush1.msra.mxu0 0.0
    %336 = vmatprep.subr.mxu0 0.0
    %337 = vmatpush1.msra.mxu0 0.0
    %338 = vmatprep.subr.mxu0 0.0
    %339 = vmatpush1.msra.mxu0 0.0
    %340 = vmatprep.subr.mxu0 0.0
    %341 = vmatpush1.msra.mxu0 0.0
    %342 = vmatprep.subr.mxu0 0.0
    %343 = vmatpush1.msra.mxu0 0.0
    %344 = vmatprep.mubr.f32.mxu0 0.0
    %345 = vmatmul.mubr.f32.gmra.mrb[0].mxu0 %v278
    %v346 = vpop.f32.mrb[0].mxu0
    %v347 = vadd.f32 0.0, %v346
    %v348 = vpop.f32.mrb[0].mxu0
    %v349 = vadd.f32 0.0, %v348
    %350 = vdwg.mxu0
    %v351 = vadd.f32 %v258, %v347
    %v352 = vadd.f32 %v259, %v349
    %v353 = vxor.u32 %v351, 2147483648
    %v354 = vxor.u32 %v352, 2147483648
    %v355 = vmul.f32 %v353, 1.442695
    %v356 = vpow.pop %v355
    %v357 = vmul.f32 %v354, 1.442695
    %v358 = vpow.pop %v357
    %v359 = vadd.f32 %v356, 1.0
    %v360 = vadd.f32 %v358, 1.0
    %v361 = vrcp.pop %v359
    %v362 = vmul.f32 1.0, %v361
    %v363 = vrcp.pop %v360
    %v364 = vmul.f32 1.0, %v363
    %v365 = vtanh.pop %v352
    %v366 = vmul.f32 %v362, 0.0
    %v367 = vmul.f32 %v362, %v365
    %369 = vrot.lane.b32.xlu0 %v367, 64
    %v370 = vpop.permute.xlu0 %369
    %v372 = vadd.f32 %v366, %v370
    %v373 = vtanh.pop %v372
    %v374 = vmul.f32 %v364, %v373
    %s375 = smul.u32 1, 2
    %s376 = smul.addr %s375, 8
    %s377 = scalar_lea.vmem [#allocation2], %s376
    %v378 = vld [vmem:[%s377] sm:$0xff]
    %v379 = vld [vmem:[%s377 + $0x8] sm:$0xff]
    %381 = vrot.lane.b32.xlu0 %v374, 64
    %v382 = vpop.permute.xlu0 %381
    %v383 = vsel %vm276, %v382, 0
    %385 = vmatprep.subr.mxu0 %v261
    %386 = vmatpush1.msra.mxu0 %v260
    %387 = vmatprep.subr.mxu0 %v263
    %388 = vmatpush1.msra.mxu0 %v262
    %389 = vmatprep.subr.mxu0 %v265
    %390 = vmatpush1.msra.mxu0 %v264
    %391 = vmatprep.subr.mxu0 %v267
    %392 = vmatpush1.msra.mxu0 %v266
    %393 = vmatprep.subr.mxu0 %v269
    %394 = vmatpush1.msra.mxu0 %v268
    %395 = vmatprep.subr.mxu0 %v271
    %396 = vmatpush1.msra.mxu0 %v270
    %397 = vmatprep.subr.mxu0 %v273
    %398 = vmatpush1.msra.mxu0 %v272
    %399 = vmatprep.subr.mxu0 %v275
    %400 = vmatpush1.msra.mxu0 %v274
    %401 = vmatprep.subr.mxu0 0.0
    %402 = vmatpush1.msra.mxu0 0.0
    %403 = vmatprep.subr.mxu0 0.0
    %404 = vmatpush1.msra.mxu0 0.0
    %405 = vmatprep.subr.mxu0 0.0
    %406 = vmatpush1.msra.mxu0 0.0
    %407 = vmatprep.subr.mxu0 0.0
    %408 = vmatpush1.msra.mxu0 0.0
    %409 = vmatprep.subr.mxu0 0.0
    %410 = vmatpush1.msra.mxu0 0.0
    %411 = vmatprep.subr.mxu0 0.0
    %412 = vmatpush1.msra.mxu0 0.0
    %413 = vmatprep.subr.mxu0 0.0
    %414 = vmatpush1.msra.mxu0 0.0
    %415 = vmatprep.subr.mxu0 0.0
    %416 = vmatpush1.msra.mxu0 0.0
    %417 = vmatprep.subr.mxu0 0.0
    %418 = vmatpush1.msra.mxu0 0.0
    %419 = vmatprep.subr.mxu0 0.0
    %420 = vmatpush1.msra.mxu0 0.0
    %421 = vmatprep.subr.mxu0 0.0
    %422 = vmatpush1.msra.mxu0 0.0
    %423 = vmatprep.subr.mxu0 0.0
    %424 = vmatpush1.msra.mxu0 0.0
    %425 = vmatprep.subr.mxu0 0.0
    %426 = vmatpush1.msra.mxu0 0.0
    %427 = vmatprep.subr.mxu0 0.0
    %428 = vmatpush1.msra.mxu0 0.0
    %429 = vmatprep.subr.mxu0 0.0
    %430 = vmatpush1.msra.mxu0 0.0
    %431 = vmatprep.subr.mxu0 0.0
    %432 = vmatpush1.msra.mxu0 0.0
    %433 = vmatprep.subr.mxu0 0.0
    %434 = vmatpush1.msra.mxu0 0.0
    %435 = vmatprep.subr.mxu0 0.0
    %436 = vmatpush1.msra.mxu0 0.0
    %437 = vmatprep.subr.mxu0 0.0
    %438 = vmatpush1.msra.mxu0 0.0
    %439 = vmatprep.subr.mxu0 0.0
    %440 = vmatpush1.msra.mxu0 0.0
    %441 = vmatprep.subr.mxu0 0.0
    %442 = vmatpush1.msra.mxu0 0.0
    %443 = vmatprep.subr.mxu0 0.0
    %444 = vmatpush1.msra.mxu0 0.0
    %445 = vmatprep.subr.mxu0 0.0
    %446 = vmatpush1.msra.mxu0 0.0
    %447 = vmatprep.subr.mxu0 0.0
    %448 = vmatpush1.msra.mxu0 0.0
    %449 = vmatprep.mubr.f32.mxu0 0.0
    %450 = vmatmul.mubr.f32.gmra.mrb[0].mxu0 %v383
    %v451 = vpop.f32.mrb[0].mxu0
    %v452 = vadd.f32 0.0, %v451
    %v453 = vpop.f32.mrb[0].mxu0
    %v454 = vadd.f32 0.0, %v453
    %455 = vdwg.mxu0
    %v456 = vadd.f32 %v378, %v452
    %v457 = vadd.f32 %v379, %v454
    %v458 = vxor.u32 %v456, 2147483648
    %v459 = vxor.u32 %v457, 2147483648
    %v460 = vmul.f32 %v458, 1.442695
    %v461 = vpow.pop %v460
    %v462 = vmul.f32 %v459, 1.442695
    %v463 = vpow.pop %v462
    %v464 = vadd.f32 %v461, 1.0
    %v465 = vadd.f32 %v463, 1.0
    %v466 = vrcp.pop %v464
    %v467 = vmul.f32 1.0, %v466
    %v468 = vrcp.pop %v465
    %v469 = vmul.f32 1.0, %v468
    %v470 = vtanh.pop %v457
    %v471 = vmul.f32 %v467, %v372
    %v472 = vmul.f32 %v467, %v470
    %474 = vrot.lane.b32.xlu0 %v472, 64
    %v475 = vpop.permute.xlu0 %474
    %v477 = vadd.f32 %v471, %v475
    %v478 = vtanh.pop %v477
    %v479 = vmul.f32 %v469, %v478
    %s480 = smul.u32 2, 2
    %s481 = smul.addr %s480, 8
    %s482 = scalar_lea.vmem [#allocation2], %s481
    %v483 = vld [vmem:[%s482] sm:$0xff]
    %v484 = vld [vmem:[%s482 + $0x8] sm:$0xff]
    %486 = vrot.lane.b32.xlu0 %v479, 64
    %v487 = vpop.permute.xlu0 %486
    %v488 = vsel %vm276, %v487, 0
    %490 = vmatprep.subr.mxu0 %v261
    %491 = vmatpush1.msra.mxu0 %v260
    %492 = vmatprep.subr.mxu0 %v263
    %493 = vmatpush1.msra.mxu0 %v262
    %494 = vmatprep.subr.mxu0 %v265
    %495 = vmatpush1.msra.mxu0 %v264
    %496 = vmatprep.subr.mxu0 %v267
    %497 = vmatpush1.msra.mxu0 %v266
    %498 = vmatprep.subr.mxu0 %v269
    %499 = vmatpush1.msra.mxu0 %v268
    %500 = vmatprep.subr.mxu0 %v271
    %501 = vmatpush1.msra.mxu0 %v270
    %502 = vmatprep.subr.mxu0 %v273
    %503 = vmatpush1.msra.mxu0 %v272
    %504 = vmatprep.subr.mxu0 %v275
    %505 = vmatpush1.msra.mxu0 %v274
    %506 = vmatprep.subr.mxu0 0.0
    %507 = vmatpush1.msra.mxu0 0.0
    %508 = vmatprep.subr.mxu0 0.0
    %509 = vmatpush1.msra.mxu0 0.0
    %510 = vmatprep.subr.mxu0 0.0
    %511 = vmatpush1.msra.mxu0 0.0
    %512 = vmatprep.subr.mxu0 0.0
    %513 = vmatpush1.msra.mxu0 0.0
    %514 = vmatprep.subr.mxu0 0.0
    %515 = vmatpush1.msra.mxu0 0.0
    %516 = vmatprep.subr.mxu0 0.0
    %517 = vmatpush1.msra.mxu0 0.0
    %518 = vmatprep.subr.mxu0 0.0
    %519 = vmatpush1.msra.mxu0 0.0
    %520 = vmatprep.subr.mxu0 0.0
    %521 = vmatpush1.msra.mxu0 0.0
    %522 = vmatprep.subr.mxu0 0.0
    %523 = vmatpush1.msra.mxu0 0.0
    %524 = vmatprep.subr.mxu0 0.0
    %525 = vmatpush1.msra.mxu0 0.0
    %526 = vmatprep.subr.mxu0 0.0
    %527 = vmatpush1.msra.mxu0 0.0
    %528 = vmatprep.subr.mxu0 0.0
    %529 = vmatpush1.msra.mxu0 0.0
    %530 = vmatprep.subr.mxu0 0.0
    %531 = vmatpush1.msra.mxu0 0.0
    %532 = vmatprep.subr.mxu0 0.0
    %533 = vmatpush1.msra.mxu0 0.0
    %534 = vmatprep.subr.mxu0 0.0
    %535 = vmatpush1.msra.mxu0 0.0
    %536 = vmatprep.subr.mxu0 0.0
    %537 = vmatpush1.msra.mxu0 0.0
    %538 = vmatprep.subr.mxu0 0.0
    %539 = vmatpush1.msra.mxu0 0.0
    %540 = vmatprep.subr.mxu0 0.0
    %541 = vmatpush1.msra.mxu0 0.0
    %542 = vmatprep.subr.mxu0 0.0
    %543 = vmatpush1.msra.mxu0 0.0
    %544 = vmatprep.subr.mxu0 0.0
    %545 = vmatpush1.msra.mxu0 0.0
    %546 = vmatprep.subr.mxu0 0.0
    %547 = vmatpush1.msra.mxu0 0.0
    %548 = vmatprep.subr.mxu0 0.0
    %549 = vmatpush1.msra.mxu0 0.0
    %550 = vmatprep.subr.mxu0 0.0
    %551 = vmatpush1.msra.mxu0 0.0
    %552 = vmatprep.subr.mxu0 0.0
    %553 = vmatpush1.msra.mxu0 0.0
    %554 = vmatprep.mubr.f32.mxu0 0.0
    %555 = vmatmul.mubr.f32.gmra.mrb[0].mxu0 %v488
    %v556 = vpop.f32.mrb[0].mxu0
    %v557 = vadd.f32 0.0, %v556
    %v558 = vpop.f32.mrb[0].mxu0
    %v559 = vadd.f32 0.0, %v558
    %560 = vdwg.mxu0
    %v561 = vadd.f32 %v483, %v557
    %v562 = vadd.f32 %v484, %v559
    %v563 = vxor.u32 %v561, 2147483648
    %v564 = vxor.u32 %v562, 2147483648
    %v565 = vmul.f32 %v563, 1.442695
    %v566 = vpow.pop %v565
    %v567 = vmul.f32 %v564, 1.442695
    %v568 = vpow.pop %v567
    %v569 = vadd.f32 %v566, 1.0
    %v570 = vadd.f32 %v568, 1.0
    %v571 = vrcp.pop %v569
    %v572 = vmul.f32 1.0, %v571
    %v573 = vrcp.pop %v570
    %v574 = vmul.f32 1.0, %v573
    %v575 = vtanh.pop %v562
    %v576 = vmul.f32 %v572, %v477
    %v577 = vmul.f32 %v572, %v575
    %579 = vrot.lane.b32.xlu0 %v577, 64
    %v580 = vpop.permute.xlu0 %579
    %v582 = vadd.f32 %v576, %v580
    %v583 = vtanh.pop %v582
    %v584 = vmul.f32 %v574, %v583
    %s585 = smul.u32 3, 2
    %s586 = smul.addr %s585, 8
    %s587 = scalar_lea.vmem [#allocation2], %s586
    %v588 = vld [vmem:[%s587] sm:$0xff]
    %v589 = vld [vmem:[%s587 + $0x8] sm:$0xff]
    %591 = vrot.lane.b32.xlu0 %v584, 64
    %v592 = vpop.permute.xlu0 %591
    %v593 = vsel %vm276, %v592, 0
    %595 = vmatprep.subr.mxu0 %v261
    %596 = vmatpush1.msra.mxu0 %v260
    %597 = vmatprep.subr.mxu0 %v263
    %598 = vmatpush1.msra.mxu0 %v262
    %599 = vmatprep.subr.mxu0 %v265
    %600 = vmatpush1.msra.mxu0 %v264
    %601 = vmatprep.subr.mxu0 %v267
    %602 = vmatpush1.msra.mxu0 %v266
    %603 = vmatprep.subr.mxu0 %v269
    %604 = vmatpush1.msra.mxu0 %v268
    %605 = vmatprep.subr.mxu0 %v271
    %606 = vmatpush1.msra.mxu0 %v270
    %607 = vmatprep.subr.mxu0 %v273
    %608 = vmatpush1.msra.mxu0 %v272
    %609 = vmatprep.subr.mxu0 %v275
    %610 = vmatpush1.msra.mxu0 %v274
    %611 = vmatprep.subr.mxu0 0.0
    %612 = vmatpush1.msra.mxu0 0.0
    %613 = vmatprep.subr.mxu0 0.0
    %614 = vmatpush1.msra.mxu0 0.0
    %615 = vmatprep.subr.mxu0 0.0
    %616 = vmatpush1.msra.mxu0 0.0
    %617 = vmatprep.subr.mxu0 0.0
    %618 = vmatpush1.msra.mxu0 0.0
    %619 = vmatprep.subr.mxu0 0.0
    %620 = vmatpush1.msra.mxu0 0.0
    %621 = vmatprep.subr.mxu0 0.0
    %622 = vmatpush1.msra.mxu0 0.0
    %623 = vmatprep.subr.mxu0 0.0
    %624 = vmatpush1.msra.mxu0 0.0
    %625 = vmatprep.subr.mxu0 0.0
    %626 = vmatpush1.msra.mxu0 0.0
    %627 = vmatprep.subr.mxu0 0.0
    %628 = vmatpush1.msra.mxu0 0.0
    %629 = vmatprep.subr.mxu0 0.0
    %630 = vmatpush1.msra.mxu0 0.0
    %631 = vmatprep.subr.mxu0 0.0
    %632 = vmatpush1.msra.mxu0 0.0
    %633 = vmatprep.subr.mxu0 0.0
    %634 = vmatpush1.msra.mxu0 0.0
    %635 = vmatprep.subr.mxu0 0.0
    %636 = vmatpush1.msra.mxu0 0.0
    %637 = vmatprep.subr.mxu0 0.0
    %638 = vmatpush1.msra.mxu0 0.0
    %639 = vmatprep.subr.mxu0 0.0
    %640 = vmatpush1.msra.mxu0 0.0
    %641 = vmatprep.subr.mxu0 0.0
    %642 = vmatpush1.msra.mxu0 0.0
    %643 = vmatprep.subr.mxu0 0.0
    %644 = vmatpush1.msra.mxu0 0.0
    %645 = vmatprep.subr.mxu0 0.0
    %646 = vmatpush1.msra.mxu0 0.0
    %647 = vmatprep.subr.mxu0 0.0
    %648 = vmatpush1.msra.mxu0 0.0
    %649 = vmatprep.subr.mxu0 0.0
    %650 = vmatpush1.msra.mxu0 0.0
    %651 = vmatprep.subr.mxu0 0.0
    %652 = vmatpush1.msra.mxu0 0.0
    %653 = vmatprep.subr.mxu0 0.0
    %654 = vmatpush1.msra.mxu0 0.0
    %655 = vmatprep.subr.mxu0 0.0
    %656 = vmatpush1.msra.mxu0 0.0
    %657 = vmatprep.subr.mxu0 0.0
    %658 = vmatpush1.msra.mxu0 0.0
    %659 = vmatprep.mubr.f32.mxu0 0.0
    %660 = vmatmul.mubr.f32.gmra.mrb[0].mxu0 %v593
    %v661 = vpop.f32.mrb[0].mxu0
    %v662 = vadd.f32 0.0, %v661
    %v663 = vpop.f32.mrb[0].mxu0
    %v664 = vadd.f32 0.0, %v663
    %665 = vdwg.mxu0
    %v666 = vadd.f32 %v588, %v662
    %v667 = vadd.f32 %v589, %v664
    %v668 = vxor.u32 %v666, 2147483648
    %v669 = vxor.u32 %v667, 2147483648
    %v670 = vmul.f32 %v668, 1.442695
    %v671 = vpow.pop %v670
    %v672 = vmul.f32 %v669, 1.442695
    %v673 = vpow.pop %v672
    %v674 = vadd.f32 %v671, 1.0
    %v675 = vadd.f32 %v673, 1.0
    %v676 = vrcp.pop %v674
    %v677 = vmul.f32 1.0, %v676
    %v678 = vrcp.pop %v675
    %v679 = vmul.f32 1.0, %v678
    %v680 = vtanh.pop %v667
    %v681 = vmul.f32 %v677, %v582
    %v682 = vmul.f32 %v677, %v680
    %684 = vrot.lane.b32.xlu0 %v682, 64
    %v685 = vpop.permute.xlu0 %684
    %v687 = vadd.f32 %v681, %v685
    %v688 = vtanh.pop %v687
    %v689 = vmul.f32 %v679, %v688
    %s690 = smul.u32 4, 2
    %s691 = smul.addr %s690, 8
    %s692 = scalar_lea.vmem [#allocation2], %s691
    %v693 = vld [vmem:[%s692] sm:$0xff]
    %v694 = vld [vmem:[%s692 + $0x8] sm:$0xff]
    %696 = vrot.lane.b32.xlu0 %v689, 64
    %v697 = vpop.permute.xlu0 %696
    %v698 = vsel %vm276, %v697, 0
    %700 = vmatprep.subr.mxu0 %v261
    %701 = vmatpush1.msra.mxu0 %v260
    %702 = vmatprep.subr.mxu0 %v263
    %703 = vmatpush1.msra.mxu0 %v262
    %704 = vmatprep.subr.mxu0 %v265
    %705 = vmatpush1.msra.mxu0 %v264
    %706 = vmatprep.subr.mxu0 %v267
    %707 = vmatpush1.msra.mxu0 %v266
    %708 = vmatprep.subr.mxu0 %v269
    %709 = vmatpush1.msra.mxu0 %v268
    %710 = vmatprep.subr.mxu0 %v271
    %711 = vmatpush1.msra.mxu0 %v270
    %712 = vmatprep.subr.mxu0 %v273
    %713 = vmatpush1.msra.mxu0 %v272
    %714 = vmatprep.subr.mxu0 %v275
    %715 = vmatpush1.msra.mxu0 %v274
    %716 = vmatprep.subr.mxu0 0.0
    %717 = vmatpush1.msra.mxu0 0.0
    %718 = vmatprep.subr.mxu0 0.0
    %719 = vmatpush1.msra.mxu0 0.0
    %720 = vmatprep.subr.mxu0 0.0
    %721 = vmatpush1.msra.mxu0 0.0
    %722 = vmatprep.subr.mxu0 0.0
    %723 = vmatpush1.msra.mxu0 0.0
    %724 = vmatprep.subr.mxu0 0.0
    %725 = vmatpush1.msra.mxu0 0.0
    %726 = vmatprep.subr.mxu0 0.0
    %727 = vmatpush1.msra.mxu0 0.0
    %728 = vmatprep.subr.mxu0 0.0
    %729 = vmatpush1.msra.mxu0 0.0
    %730 = vmatprep.subr.mxu0 0.0
    %731 = vmatpush1.msra.mxu0 0.0
    %732 = vmatprep.subr.mxu0 0.0
    %733 = vmatpush1.msra.mxu0 0.0
    %734 = vmatprep.subr.mxu0 0.0
    %735 = vmatpush1.msra.mxu0 0.0
    %736 = vmatprep.subr.mxu0 0.0
    %737 = vmatpush1.msra.mxu0 0.0
    %738 = vmatprep.subr.mxu0 0.0
    %739 = vmatpush1.msra.mxu0 0.0
    %740 = vmatprep.subr.mxu0 0.0
    %741 = vmatpush1.msra.mxu0 0.0
    %742 = vmatprep.subr.mxu0 0.0
    %743 = vmatpush1.msra.mxu0 0.0
    %744 = vmatprep.subr.mxu0 0.0
    %745 = vmatpush1.msra.mxu0 0.0
    %746 = vmatprep.subr.mxu0 0.0
    %747 = vmatpush1.msra.mxu0 0.0
    %748 = vmatprep.subr.mxu0 0.0
    %749 = vmatpush1.msra.mxu0 0.0
    %750 = vmatprep.subr.mxu0 0.0
    %751 = vmatpush1.msra.mxu0 0.0
    %752 = vmatprep.subr.mxu0 0.0
    %753 = vmatpush1.msra.mxu0 0.0
    %754 = vmatprep.subr.mxu0 0.0
    %755 = vmatpush1.msra.mxu0 0.0
    %756 = vmatprep.subr.mxu0 0.0
    %757 = vmatpush1.msra.mxu0 0.0
    %758 = vmatprep.subr.mxu0 0.0
    %759 = vmatpush1.msra.mxu0 0.0
    %760 = vmatprep.subr.mxu0 0.0
    %761 = vmatpush1.msra.mxu0 0.0
    %762 = vmatprep.subr.mxu0 0.0
    %763 = vmatpush1.msra.mxu0 0.0
    %764 = vmatprep.mubr.f32.mxu0 0.0
    %765 = vmatmul.mubr.f32.gmra.mrb[0].mxu0 %v698
    %v766 = vpop.f32.mrb[0].mxu0
    %v767 = vadd.f32 0.0, %v766
    %v768 = vpop.f32.mrb[0].mxu0
    %v769 = vadd.f32 0.0, %v768
    %770 = vdwg.mxu0
    %v771 = vadd.f32 %v693, %v767
    %v772 = vadd.f32 %v694, %v769
    %v773 = vxor.u32 %v771, 2147483648
    %v774 = vxor.u32 %v772, 2147483648
    %v775 = vmul.f32 %v773, 1.442695
    %v776 = vpow.pop %v775
    %v777 = vmul.f32 %v774, 1.442695
    %v778 = vpow.pop %v777
    %v779 = vadd.f32 %v776, 1.0
    %v780 = vadd.f32 %v778, 1.0
    %v781 = vrcp.pop %v779
    %v782 = vmul.f32 1.0, %v781
    %v783 = vrcp.pop %v780
    %v784 = vmul.f32 1.0, %v783
    %v785 = vtanh.pop %v772
    %v786 = vmul.f32 %v782, %v687
    %v787 = vmul.f32 %v782, %v785
    %789 = vrot.lane.b32.xlu0 %v787, 64
    %v790 = vpop.permute.xlu0 %789
    %v792 = vadd.f32 %v786, %v790
    %v793 = vtanh.pop %v792
    %v794 = vmul.f32 %v784, %v793
    %s795 = smul.u32 5, 2
    %s796 = smul.addr %s795, 8
    %s797 = scalar_lea.vmem [#allocation2], %s796
    %v798 = vld [vmem:[%s797] sm:$0xff]
    %v799 = vld [vmem:[%s797 + $0x8] sm:$0xff]
    %801 = vrot.lane.b32.xlu0 %v794, 64
    %v802 = vpop.permute.xlu0 %801
    %v803 = vsel %vm276, %v802, 0
    %805 = vmatprep.subr.mxu0 %v261
    %806 = vmatpush1.msra.mxu0 %v260
    %807 = vmatprep.subr.mxu0 %v263
    %808 = vmatpush1.msra.mxu0 %v262
    %809 = vmatprep.subr.mxu0 %v265
    %810 = vmatpush1.msra.mxu0 %v264
    %811 = vmatprep.subr.mxu0 %v267
    %812 = vmatpush1.msra.mxu0 %v266
    %813 = vmatprep.subr.mxu0 %v269
    %814 = vmatpush1.msra.mxu0 %v268
    %815 = vmatprep.subr.mxu0 %v271
    %816 = vmatpush1.msra.mxu0 %v270
    %817 = vmatprep.subr.mxu0 %v273
    %818 = vmatpush1.msra.mxu0 %v272
    %819 = vmatprep.subr.mxu0 %v275
    %820 = vmatpush1.msra.mxu0 %v274
    %821 = vmatprep.subr.mxu0 0.0
    %822 = vmatpush1.msra.mxu0 0.0
    %823 = vmatprep.subr.mxu0 0.0
    %824 = vmatpush1.msra.mxu0 0.0
    %825 = vmatprep.subr.mxu0 0.0
    %826 = vmatpush1.msra.mxu0 0.0
    %827 = vmatprep.subr.mxu0 0.0
    %828 = vmatpush1.msra.mxu0 0.0
    %829 = vmatprep.subr.mxu0 0.0
    %830 = vmatpush1.msra.mxu0 0.0
    %831 = vmatprep.subr.mxu0 0.0
    %832 = vmatpush1.msra.mxu0 0.0
    %833 = vmatprep.subr.mxu0 0.0
    %834 = vmatpush1.msra.mxu0 0.0
    %835 = vmatprep.subr.mxu0 0.0
    %836 = vmatpush1.msra.mxu0 0.0
    %837 = vmatprep.subr.mxu0 0.0
    %838 = vmatpush1.msra.mxu0 0.0
    %839 = vmatprep.subr.mxu0 0.0
    %840 = vmatpush1.msra.mxu0 0.0
    %841 = vmatprep.subr.mxu0 0.0
    %842 = vmatpush1.msra.mxu0 0.0
    %843 = vmatprep.subr.mxu0 0.0
    %844 = vmatpush1.msra.mxu0 0.0
    %845 = vmatprep.subr.mxu0 0.0
    %846 = vmatpush1.msra.mxu0 0.0
    %847 = vmatprep.subr.mxu0 0.0
    %848 = vmatpush1.msra.mxu0 0.0
    %849 = vmatprep.subr.mxu0 0.0
    %850 = vmatpush1.msra.mxu0 0.0
    %851 = vmatprep.subr.mxu0 0.0
    %852 = vmatpush1.msra.mxu0 0.0
    %853 = vmatprep.subr.mxu0 0.0
    %854 = vmatpush1.msra.mxu0 0.0
    %855 = vmatprep.subr.mxu0 0.0
    %856 = vmatpush1.msra.mxu0 0.0
    %857 = vmatprep.subr.mxu0 0.0
    %858 = vmatpush1.msra.mxu0 0.0
    %859 = vmatprep.subr.mxu0 0.0
    %860 = vmatpush1.msra.mxu0 0.0
    %861 = vmatprep.subr.mxu0 0.0
    %862 = vmatpush1.msra.mxu0 0.0
    %863 = vmatprep.subr.mxu0 0.0
    %864 = vmatpush1.msra.mxu0 0.0
    %865 = vmatprep.subr.mxu0 0.0
    %866 = vmatpush1.msra.mxu0 0.0
    %867 = vmatprep.subr.mxu0 0.0
    %868 = vmatpush1.msra.mxu0 0.0
    %869 = vmatprep.mubr.f32.mxu0 0.0
    %870 = vmatmul.mubr.f32.gmra.mrb[0].mxu0 %v803
    %v871 = vpop.f32.mrb[0].mxu0
    %v872 = vadd.f32 0.0, %v871
    %v873 = vpop.f32.mrb[0].mxu0
    %v874 = vadd.f32 0.0, %v873
    %875 = vdwg.mxu0
    %v876 = vadd.f32 %v798, %v872
    %v877 = vadd.f32 %v799, %v874
    %v878 = vxor.u32 %v876, 2147483648
    %v879 = vxor.u32 %v877, 2147483648
    %v880 = vmul.f32 %v878, 1.442695
    %v881 = vpow.pop %v880
    %v882 = vmul.f32 %v879, 1.442695
    %v883 = vpow.pop %v882
    %v884 = vadd.f32 %v881, 1.0
    %v885 = vadd.f32 %v883, 1.0
    %v886 = vrcp.pop %v884
    %v887 = vmul.f32 1.0, %v886
    %v888 = vrcp.pop %v885
    %v889 = vmul.f32 1.0, %v888
    %v890 = vtanh.pop %v877
    %v891 = vmul.f32 %v887, %v792
    %v892 = vmul.f32 %v887, %v890
    %894 = vrot.lane.b32.xlu0 %v892, 64
    %v895 = vpop.permute.xlu0 %894
    %v897 = vadd.f32 %v891, %v895
    %v898 = vtanh.pop %v897
    %v899 = vmul.f32 %v889, %v898
    %s900 = smul.u32 6, 2
    %s901 = smul.addr %s900, 8
    %s902 = scalar_lea.vmem [#allocation2], %s901
    %v903 = vld [vmem:[%s902] sm:$0xff]
    %v904 = vld [vmem:[%s902 + $0x8] sm:$0xff]
    %906 = vrot.lane.b32.xlu0 %v899, 64
    %v907 = vpop.permute.xlu0 %906
    %v908 = vsel %vm276, %v907, 0
    %910 = vmatprep.subr.mxu0 %v261
    %911 = vmatpush1.msra.mxu0 %v260
    %912 = vmatprep.subr.mxu0 %v263
    %913 = vmatpush1.msra.mxu0 %v262
    %914 = vmatprep.subr.mxu0 %v265
    %915 = vmatpush1.msra.mxu0 %v264
    %916 = vmatprep.subr.mxu0 %v267
    %917 = vmatpush1.msra.mxu0 %v266
    %918 = vmatprep.subr.mxu0 %v269
    %919 = vmatpush1.msra.mxu0 %v268
    %920 = vmatprep.subr.mxu0 %v271
    %921 = vmatpush1.msra.mxu0 %v270
    %922 = vmatprep.subr.mxu0 %v273
    %923 = vmatpush1.msra.mxu0 %v272
    %924 = vmatprep.subr.mxu0 %v275
    %925 = vmatpush1.msra.mxu0 %v274
    %926 = vmatprep.subr.mxu0 0.0
    %927 = vmatpush1.msra.mxu0 0.0
    %928 = vmatprep.subr.mxu0 0.0
    %929 = vmatpush1.msra.mxu0 0.0
    %930 = vmatprep.subr.mxu0 0.0
    %931 = vmatpush1.msra.mxu0 0.0
    %932 = vmatprep.subr.mxu0 0.0
    %933 = vmatpush1.msra.mxu0 0.0
    %934 = vmatprep.subr.mxu0 0.0
    %935 = vmatpush1.msra.mxu0 0.0
    %936 = vmatprep.subr.mxu0 0.0
    %937 = vmatpush1.msra.mxu0 0.0
    %938 = vmatprep.subr.mxu0 0.0
    %939 = vmatpush1.msra.mxu0 0.0
    %940 = vmatprep.subr.mxu0 0.0
    %941 = vmatpush1.msra.mxu0 0.0
    %942 = vmatprep.subr.mxu0 0.0
    %943 = vmatpush1.msra.mxu0 0.0
    %944 = vmatprep.subr.mxu0 0.0
    %945 = vmatpush1.msra.mxu0 0.0
    %946 = vmatprep.subr.mxu0 0.0
    %947 = vmatpush1.msra.mxu0 0.0
    %948 = vmatprep.subr.mxu0 0.0
    %949 = vmatpush1.msra.mxu0 0.0
    %950 = vmatprep.subr.mxu0 0.0
    %951 = vmatpush1.msra.mxu0 0.0
    %952 = vmatprep.subr.mxu0 0.0
    %953 = vmatpush1.msra.mxu0 0.0
    %954 = vmatprep.subr.mxu0 0.0
    %955 = vmatpush1.msra.mxu0 0.0
    %956 = vmatprep.subr.mxu0 0.0
    %957 = vmatpush1.msra.mxu0 0.0
    %958 = vmatprep.subr.mxu0 0.0
    %959 = vmatpush1.msra.mxu0 0.0
    %960 = vmatprep.subr.mxu0 0.0
    %961 = vmatpush1.msra.mxu0 0.0
    %962 = vmatprep.subr.mxu0 0.0
    %963 = vmatpush1.msra.mxu0 0.0
    %964 = vmatprep.subr.mxu0 0.0
    %965 = vmatpush1.msra.mxu0 0.0
    %966 = vmatprep.subr.mxu0 0.0
    %967 = vmatpush1.msra.mxu0 0.0
    %968 = vmatprep.subr.mxu0 0.0
    %969 = vmatpush1.msra.mxu0 0.0
    %970 = vmatprep.subr.mxu0 0.0
    %971 = vmatpush1.msra.mxu0 0.0
    %972 = vmatprep.subr.mxu0 0.0
    %973 = vmatpush1.msra.mxu0 0.0
    %974 = vmatprep.mubr.f32.mxu0 0.0
    %975 = vmatmul.mubr.f32.gmra.mrb[0].mxu0 %v908
    %v976 = vpop.f32.mrb[0].mxu0
    %v977 = vadd.f32 0.0, %v976
    %v978 = vpop.f32.mrb[0].mxu0
    %v979 = vadd.f32 0.0, %v978
    %980 = vdwg.mxu0
    %v981 = vadd.f32 %v903, %v977
    %v982 = vadd.f32 %v904, %v979
    %v983 = vxor.u32 %v981, 2147483648
    %v984 = vxor.u32 %v982, 2147483648
    %v985 = vmul.f32 %v983, 1.442695
    %v986 = vpow.pop %v985
    %v987 = vmul.f32 %v984, 1.442695
    %v988 = vpow.pop %v987
    %v989 = vadd.f32 %v986, 1.0
    %v990 = vadd.f32 %v988, 1.0
    %v991 = vrcp.pop %v989
    %v992 = vmul.f32 1.0, %v991
    %v993 = vrcp.pop %v990
    %v994 = vmul.f32 1.0, %v993
    %v995 = vtanh.pop %v982
    %v996 = vmul.f32 %v992, %v897
    %v997 = vmul.f32 %v992, %v995
    %999 = vrot.lane.b32.xlu0 %v997, 64
    %v1000 = vpop.permute.xlu0 %999
    %v1002 = vadd.f32 %v996, %v1000
    %v1003 = vtanh.pop %v1002
    %v1004 = vmul.f32 %v994, %v1003
    %s1005 = smul.u32 7, 2
    %s1006 = smul.addr %s1005, 8
    %s1007 = scalar_lea.vmem [#allocation2], %s1006
    %v1008 = vld [vmem:[%s1007] sm:$0xff]
    %v1009 = vld [vmem:[%s1007 + $0x8] sm:$0xff]
    %1011 = vrot.lane.b32.xlu0 %v1004, 64
    %v1012 = vpop.permute.xlu0 %1011
    %v1013 = vsel %vm276, %v1012, 0
    %1015 = vmatprep.subr.mxu0 %v261
    %1016 = vmatpush1.msra.mxu0 %v260
    %1017 = vmatprep.subr.mxu0 %v263
    %1018 = vmatpush1.msra.mxu0 %v262
    %1019 = vmatprep.subr.mxu0 %v265
    %1020 = vmatpush1.msra.mxu0 %v264
    %1021 = vmatprep.subr.mxu0 %v267
    %1022 = vmatpush1.msra.mxu0 %v266
    %1023 = vmatprep.subr.mxu0 %v269
    %1024 = vmatpush1.msra.mxu0 %v268
    %1025 = vmatprep.subr.mxu0 %v271
    %1026 = vmatpush1.msra.mxu0 %v270
    %1027 = vmatprep.subr.mxu0 %v273
    %1028 = vmatpush1.msra.mxu0 %v272
    %1029 = vmatprep.subr.mxu0 %v275
    %1030 = vmatpush1.msra.mxu0 %v274
    %1031 = vmatprep.subr.mxu0 0.0
    %1032 = vmatpush1.msra.mxu0 0.0
    %1033 = vmatprep.subr.mxu0 0.0
    %1034 = vmatpush1.msra.mxu0 0.0
    %1035 = vmatprep.subr.mxu0 0.0
    %1036 = vmatpush1.msra.mxu0 0.0
    %1037 = vmatprep.subr.mxu0 0.0
    %1038 = vmatpush1.msra.mxu0 0.0
    %1039 = vmatprep.subr.mxu0 0.0
    %1040 = vmatpush1.msra.mxu0 0.0
    %1041 = vmatprep.subr.mxu0 0.0
    %1042 = vmatpush1.msra.mxu0 0.0
    %1043 = vmatprep.subr.mxu0 0.0
    %1044 = vmatpush1.msra.mxu0 0.0
    %1045 = vmatprep.subr.mxu0 0.0
    %1046 = vmatpush1.msra.mxu0 0.0
    %1047 = vmatprep.subr.mxu0 0.0
    %1048 = vmatpush1.msra.mxu0 0.0
    %1049 = vmatprep.subr.mxu0 0.0
    %1050 = vmatpush1.msra.mxu0 0.0
    %1051 = vmatprep.subr.mxu0 0.0
    %1052 = vmatpush1.msra.mxu0 0.0
    %1053 = vmatprep.subr.mxu0 0.0
    %1054 = vmatpush1.msra.mxu0 0.0
    %1055 = vmatprep.subr.mxu0 0.0
    %1056 = vmatpush1.msra.mxu0 0.0
    %1057 = vmatprep.subr.mxu0 0.0
    %1058 = vmatpush1.msra.mxu0 0.0
    %1059 = vmatprep.subr.mxu0 0.0
    %1060 = vmatpush1.msra.mxu0 0.0
    %1061 = vmatprep.subr.mxu0 0.0
    %1062 = vmatpush1.msra.mxu0 0.0
    %1063 = vmatprep.subr.mxu0 0.0
    %1064 = vmatpush1.msra.mxu0 0.0
    %1065 = vmatprep.subr.mxu0 0.0
    %1066 = vmatpush1.msra.mxu0 0.0
    %1067 = vmatprep.subr.mxu0 0.0
    %1068 = vmatpush1.msra.mxu0 0.0
    %1069 = vmatprep.subr.mxu0 0.0
    %1070 = vmatpush1.msra.mxu0 0.0
    %1071 = vmatprep.subr.mxu0 0.0
    %1072 = vmatpush1.msra.mxu0 0.0
    %1073 = vmatprep.subr.mxu0 0.0
    %1074 = vmatpush1.msra.mxu0 0.0
    %1075 = vmatprep.subr.mxu0 0.0
    %1076 = vmatpush1.msra.mxu0 0.0
    %1077 = vmatprep.subr.mxu0 0.0
    %1078 = vmatpush1.msra.mxu0 0.0
    %1079 = vmatprep.mubr.f32.mxu0 0.0
    %1080 = vmatmul.mubr.f32.gmra.mrb[0].mxu0 %v1013
    %v1081 = vpop.f32.mrb[0].mxu0
    %v1082 = vadd.f32 0.0, %v1081
    %v1083 = vpop.f32.mrb[0].mxu0
    %v1084 = vadd.f32 0.0, %v1083
    %1085 = vdwg.mxu0
    %v1086 = vadd.f32 %v1008, %v1082
    %v1087 = vadd.f32 %v1009, %v1084
    %v1088 = vxor.u32 %v1086, 2147483648
    %v1089 = vxor.u32 %v1087, 2147483648
    %v1090 = vmul.f32 %v1088, 1.442695
    %v1091 = vpow.pop %v1090
    %v1092 = vmul.f32 %v1089, 1.442695
    %v1093 = vpow.pop %v1092
    %v1094 = vadd.f32 %v1091, 1.0
    %v1095 = vadd.f32 %v1093, 1.0
    %v1096 = vrcp.pop %v1094
    %v1097 = vmul.f32 1.0, %v1096
    %v1098 = vrcp.pop %v1095
    %v1099 = vmul.f32 1.0, %v1098
    %v1100 = vtanh.pop %v1087
    %v1101 = vmul.f32 %v1097, %v1002
    %v1102 = vmul.f32 %v1097, %v1100
    %1104 = vrot.lane.b32.xlu0 %v1102, 64
    %v1105 = vpop.permute.xlu0 %1104
    %v1107 = vadd.f32 %v1101, %v1105
    %v1108 = vtanh.pop %v1107
    %v1109 = vmul.f32 %v1099, %v1108
    %v1110 = vld [vmem:[%s4] sm:$0xff]
    %v1111 = vld [vmem:[%s4 + $0x8] sm:$0xff]
    %v1112 = vld [vmem:[%s4 + $0x10] sm:$0xff]
    %v1113 = vld [vmem:[%s4 + $0x18] sm:$0xff]
    %v1114 = vld [vmem:[%s4 + $0x20] sm:$0xff]
    %v1115 = vld [vmem:[%s4 + $0x28] sm:$0xff]
    %v1116 = vld [vmem:[%s4 + $0x30] sm:$0xff]
    %v1117 = vld [vmem:[%s4 + $0x38] sm:$0xff]
    %v1118 = vld [vmem:[%s5] sm:$0x1]
    %v1120 = vlaneseq
    %v1121 = vshrl.u32 %v1120, 7
    %v1122 = vsub.s32 0, %v1121
    %v1123 = vrot.slane %v1118, %v1122
    %1126 = vrot.lane.b32.xlu0 %v1109, 64
    %v1127 = vpop.permute.xlu0 %1126
    %v1128 = vsel %vm276, %v1127, 0
    %1130 = vmatprep.subr.mxu0 0.0
    %1131 = vmatpush1.msra.mxu0 %v1110
    %1132 = vmatprep.subr.mxu0 0.0
    %1133 = vmatpush1.msra.mxu0 %v1111
    %1134 = vmatprep.subr.mxu0 0.0
    %1135 = vmatpush1.msra.mxu0 %v1112
    %1136 = vmatprep.subr.mxu0 0.0
    %1137 = vmatpush1.msra.mxu0 %v1113
    %1138 = vmatprep.subr.mxu0 0.0
    %1139 = vmatpush1.msra.mxu0 %v1114
    %1140 = vmatprep.subr.mxu0 0.0
    %1141 = vmatpush1.msra.mxu0 %v1115
    %1142 = vmatprep.subr.mxu0 0.0
    %1143 = vmatpush1.msra.mxu0 %v1116
    %1144 = vmatprep.subr.mxu0 0.0
    %1145 = vmatpush1.msra.mxu0 %v1117
    %1146 = vmatprep.subr.mxu0 0.0
    %1147 = vmatpush1.msra.mxu0 0.0
    %1148 = vmatprep.subr.mxu0 0.0
    %1149 = vmatpush1.msra.mxu0 0.0
    %1150 = vmatprep.subr.mxu0 0.0
    %1151 = vmatpush1.msra.mxu0 0.0
    %1152 = vmatprep.subr.mxu0 0.0
    %1153 = vmatpush1.msra.mxu0 0.0
    %1154 = vmatprep.subr.mxu0 0.0
    %1155 = vmatpush1.msra.mxu0 0.0
    %1156 = vmatprep.subr.mxu0 0.0
    %1157 = vmatpush1.msra.mxu0 0.0
    %1158 = vmatprep.subr.mxu0 0.0
    %1159 = vmatpush1.msra.mxu0 0.0
    %1160 = vmatprep.subr.mxu0 0.0
    %1161 = vmatpush1.msra.mxu0 0.0
    %1162 = vmatprep.subr.mxu0 0.0
    %1163 = vmatpush1.msra.mxu0 0.0
    %1164 = vmatprep.subr.mxu0 0.0
    %1165 = vmatpush1.msra.mxu0 0.0
    %1166 = vmatprep.subr.mxu0 0.0
    %1167 = vmatpush1.msra.mxu0 0.0
    %1168 = vmatprep.subr.mxu0 0.0
    %1169 = vmatpush1.msra.mxu0 0.0
    %1170 = vmatprep.subr.mxu0 0.0
    %1171 = vmatpush1.msra.mxu0 0.0
    %1172 = vmatprep.subr.mxu0 0.0
    %1173 = vmatpush1.msra.mxu0 0.0
    %1174 = vmatprep.subr.mxu0 0.0
    %1175 = vmatpush1.msra.mxu0 0.0
    %1176 = vmatprep.subr.mxu0 0.0
    %1177 = vmatpush1.msra.mxu0 0.0
    %1178 = vmatprep.subr.mxu0 0.0
    %1179 = vmatpush1.msra.mxu0 0.0
    %1180 = vmatprep.subr.mxu0 0.0
    %1181 = vmatpush1.msra.mxu0 0.0
    %1182 = vmatprep.subr.mxu0 0.0
    %1183 = vmatpush1.msra.mxu0 0.0
    %1184 = vmatprep.subr.mxu0 0.0
    %1185 = vmatpush1.msra.mxu0 0.0
    %1186 = vmatprep.subr.mxu0 0.0
    %1187 = vmatpush1.msra.mxu0 0.0
    %1188 = vmatprep.subr.mxu0 0.0
    %1189 = vmatpush1.msra.mxu0 0.0
    %1190 = vmatprep.subr.mxu0 0.0
    %1191 = vmatpush1.msra.mxu0 0.0
    %1192 = vmatprep.subr.mxu0 0.0
    %1193 = vmatpush1.msra.mxu0 0.0
    %1194 = vmatprep.mubr.f32.mxu0 0.0
    %1195 = vmatmul.mubr.f32.gmra.mrb[0].mxu0 %v1128
    %v1196 = vpop.f32.mrb[0].mxu0
    %v1197 = vadd.f32 %v1123, %v1196
    %v1198 = vpop.f32.mrb[0].mxu0
    %1199 = vdwg.mxu0
    %v1200 = vmax.f32 %v1197, 0.0
    %v1201 = vld [vmem:[#allocation6] sm:$0xff]
    %v1202 = vld [vmem:[#allocation6 + $0x8] sm:$0xff]
    %v1203 = vld [vmem:[#allocation6 + $0x10] sm:$0xff]
    %v1204 = vld [vmem:[#allocation6 + $0x18] sm:$0xff]
    %v1205 = vld [vmem:[#allocation6 + $0x20] sm:$0xff]
    %v1206 = vld [vmem:[#allocation6 + $0x28] sm:$0xff]
    %v1207 = vld [vmem:[#allocation6 + $0x30] sm:$0xff]
    %v1208 = vld [vmem:[#allocation6 + $0x38] sm:$0xff]
    %v1209 = vld [vmem:[%s7] sm:$0x1]
    %v1211 = vlaneseq
    %v1212 = vshrl.u32 %v1211, 7
    %v1213 = vsub.s32 0, %v1212
    %v1214 = vrot.slane %v1209, %v1213
    %v1217 = vsel %vm276, %v1200, 0
    %1219 = vmatprep.subr.mxu0 0.0
    %1220 = vmatpush1.msra.mxu0 %v1201
    %1221 = vmatprep.subr.mxu0 0.0
    %1222 = vmatpush1.msra.mxu0 %v1202
    %1223 = vmatprep.subr.mxu0 0.0
    %1224 = vmatpush1.msra.mxu0 %v1203
    %1225 = vmatprep.subr.mxu0 0.0
    %1226 = vmatpush1.msra.mxu0 %v1204
    %1227 = vmatprep.subr.mxu0 0.0
    %1228 = vmatpush1.msra.mxu0 %v1205
    %1229 = vmatprep.subr.mxu0 0.0
    %1230 = vmatpush1.msra.mxu0 %v1206
    %1231 = vmatprep.subr.mxu0 0.0
    %1232 = vmatpush1.msra.mxu0 %v1207
    %1233 = vmatprep.subr.mxu0 0.0
    %1234 = vmatpush1.msra.mxu0 %v1208
    %1235 = vmatprep.subr.mxu0 0.0
    %1236 = vmatpush1.msra.mxu0 0.0
    %1237 = vmatprep.subr.mxu0 0.0
    %1238 = vmatpush1.msra.mxu0 0.0
    %1239 = vmatprep.subr.mxu0 0.0
    %1240 = vmatpush1.msra.mxu0 0.0
    %1241 = vmatprep.subr.mxu0 0.0
    %1242 = vmatpush1.msra.mxu0 0.0
    %1243 = vmatprep.subr.mxu0 0.0
    %1244 = vmatpush1.msra.mxu0 0.0
    %1245 = vmatprep.subr.mxu0 0.0
    %1246 = vmatpush1.msra.mxu0 0.0
    %1247 = vmatprep.subr.mxu0 0.0
    %1248 = vmatpush1.msra.mxu0 0.0
    %1249 = vmatprep.subr.mxu0 0.0
    %1250 = vmatpush1.msra.mxu0 0.0
    %1251 = vmatprep.subr.mxu0 0.0
    %1252 = vmatpush1.msra.mxu0 0.0
    %1253 = vmatprep.subr.mxu0 0.0
    %1254 = vmatpush1.msra.mxu0 0.0
    %1255 = vmatprep.subr.mxu0 0.0
    %1256 = vmatpush1.msra.mxu0 0.0
    %1257 = vmatprep.subr.mxu0 0.0
    %1258 = vmatpush1.msra.mxu0 0.0
    %1259 = vmatprep.subr.mxu0 0.0
    %1260 = vmatpush1.msra.mxu0 0.0
    %1261 = vmatprep.subr.mxu0 0.0
    %1262 = vmatpush1.msra.mxu0 0.0
    %1263 = vmatprep.subr.mxu0 0.0
    %1264 = vmatpush1.msra.mxu0 0.0
    %1265 = vmatprep.subr.mxu0 0.0
    %1266 = vmatpush1.msra.mxu0 0.0
    %1267 = vmatprep.subr.mxu0 0.0
    %1268 = vmatpush1.msra.mxu0 0.0
    %1269 = vmatprep.subr.mxu0 0.0
    %1270 = vmatpush1.msra.mxu0 0.0
    %1271 = vmatprep.subr.mxu0 0.0
    %1272 = vmatpush1.msra.mxu0 0.0
    %1273 = vmatprep.subr.mxu0 0.0
    %1274 = vmatpush1.msra.mxu0 0.0
    %1275 = vmatprep.subr.mxu0 0.0
    %1276 = vmatpush1.msra.mxu0 0.0
    %1277 = vmatprep.subr.mxu0 0.0
    %1278 = vmatpush1.msra.mxu0 0.0
    %1279 = vmatprep.subr.mxu0 0.0
    %1280 = vmatpush1.msra.mxu0 0.0
    %1281 = vmatprep.subr.mxu0 0.0
    %1282 = vmatpush1.msra.mxu0 0.0
    %1283 = vmatprep.mubr.f32.mxu0 0.0
    %1284 = vmatmul.mubr.f32.gmra.mrb[0].mxu0 %v1217
    %v1285 = vpop.f32.mrb[0].mxu0
    %v1286 = vadd.f32 %v1214, %v1285
    %v1287 = vpop.f32.mrb[0].mxu0
    %1288 = vdwg.mxu0
    %1289 = vst [vmem:[#allocation8] sm:$0xff] %v1286
    // Predicated region
    $region42: #{tpu_custom_call.1} parent=1 // pred_check
      _
    $region43: #{tpu_custom_call.1} parent=1 // pred_check_branch
      %1291 = sbr.rel (0) target = $region45
    $region44: #{tpu_custom_call.1} parent=1 // pred_region
      %s1293 = ssub.s32 128, 128
      %1294 = vsyncadd [#allocation5], %s1293
      %s1296 = sshll.u32 [#allocation8], 4
      %s1297 = int_to_ptr.vmem [resolvable:$true] %s1296
      %1299 = dma.vmem_to_hbm [thread:$0]  %s1297, 128, %s8, [#allocation5]
    $region45: #{tpu_custom_call.1} parent=1 // pred_fallthru
      _
    // Predicated region
    $region46: #{tpu_custom_call.1} parent=1 // pred_check
      _
    $region47: #{tpu_custom_call.1} parent=1 // pred_check_branch
      %1301 = sbr.rel (0) target = $region49
    $region48: #{tpu_custom_call.1} parent=1 // pred_region
      %1302 = dma.done [#allocation5], 128
    $region49: #{tpu_custom_call.1} parent=1 // pred_fallthru
      _
    %1303 = vsyncpa [#allocation4], 1
    %1304 = vsyncpa [#allocation7], 1
    %1305 = vsyncpa [#allocation5], 1

</llo_original>
